<compile_context>
chip_gen: v5e
topology: v5e:2x2
jax: 0.10.0
libtpu: 0.0.40
codegen_flags: <defaults>
</compile_context>

<pallas_src>
import jax
import jax.numpy as jnp
from jax.experimental import pallas as pl
from jax.experimental.pallas import tpu as pltpu

# --- synthetic small CLIP-text config (structure matches CLIPTextModel) ---
VOCAB = 512
HIDDEN = 64
INTERMEDIATE = 256
HEADS = 4
HEAD_DIM = HIDDEN // HEADS
N_LAYERS = 2
MAX_POS = 77           # CLIP max_position_embeddings (max_length=77 in the module)
EPS = 1e-5
EOT_TOKEN = VOCAB - 1  # real CLIP: 49407 (EOT is the max vocab id)

assert HIDDEN % HEADS == 0


# ----------------------------- Pallas kernels ------------------------------

def _ln(x, g, b):
    """LayerNorm over the last axis, all statistics in f32."""
    mean = jnp.mean(x, axis=-1, keepdims=True)
    var = jnp.mean(jnp.square(x - mean), axis=-1, keepdims=True)
    return (x - mean) * jax.lax.rsqrt(var + EPS) * g + b


def _clip_stack_kernel(x_ref,
                       ln1g_ref, ln1b_ref, wqkv_ref, bqkv_ref, wo_ref, bo_ref,
                       ln2g_ref, ln2b_ref, w1_ref, b1_ref, w2_ref, b2_ref,
                       lnfg_ref, lnfb_ref,
                       o_ref,
                       act_ref, attn_ref):
    """One grid step = one encoder layer applied to one (Bt, S, H) batch block.

    Activation carried across the layer grid axis in `act_ref` (VMEM); per-layer
    weight slabs are selected by the layer index_map so Pallas prefetches layer
    l+1's weights while layer l computes.  Final LayerNorm fused as the epilogue.
    """
    l = pl.program_id(1)
    last = pl.num_programs(1) - 1

    @pl.when(l == 0)
    def _():
        act_ref[...] = x_ref[...]

    Bt, S, H = act_ref.shape
    x2 = act_ref[...].reshape(Bt * S, H)                          # (Bt*S, H) f32

    # --- self-attention sub-block (pre-LN), QKV fused into one MXU pass ------
    h = _ln(x2, ln1g_ref[0], ln1b_ref[0])
    qkv = jnp.dot(h.astype(jnp.bfloat16), wqkv_ref[0],
                  preferred_element_type=jnp.float32) + bqkv_ref[0]   # (Bt*S, 3H)

    # causal mask + scale hoisted: built once, shared by every head / batch elem
    row = jax.lax.broadcasted_iota(jnp.int32, (S, S), 0)
    col = jax.lax.broadcasted_iota(jnp.int32, (S, S), 1)
    causal = col <= row
    scale = jnp.float32(HEAD_DIM ** -0.5)

    # Static head loop; each head's result is written directly into its lane
    # slice of the VMEM attn scratch (no Python-list concatenate, only one head
    # output live at a time).  The leading-dim reshape (Bt*S, D) <-> (Bt, S, D)
    # is layout-trivial because S is a multiple of 8.
    for hh in range(HEADS):
        c = hh * HEAD_DIM
        qh = (qkv[:, c:c + HEAD_DIM] * scale).reshape(Bt, S, HEAD_DIM)
        kh = qkv[:, HIDDEN + c:HIDDEN + c + HEAD_DIM].reshape(Bt, S, HEAD_DIM)
        vh = qkv[:, 2 * HIDDEN + c:2 * HIDDEN + c + HEAD_DIM].reshape(Bt, S, HEAD_DIM)
        s = jnp.einsum('bqd,bkd->bqk', qh.astype(jnp.bfloat16),
                       kh.astype(jnp.bfloat16),
                       preferred_element_type=jnp.float32)            # (Bt, S, S)
        s = jnp.where(causal, s, jnp.float32(-1e9))                   # CLIP causal mask
        m = jnp.max(s, axis=-1, keepdims=True)
        e = jnp.exp(s - m)                                            # f32 softmax
        p = e * pl.reciprocal(jnp.sum(e, axis=-1, keepdims=True), approx=True)
        o = jnp.einsum('bqk,bkd->bqd', p.astype(jnp.bfloat16),
                       vh.astype(jnp.bfloat16),
                       preferred_element_type=jnp.float32)            # (Bt, S, D)
        attn_ref[:, c:c + HEAD_DIM] = o.reshape(Bt * S, HEAD_DIM)

    a = jnp.dot(attn_ref[...].astype(jnp.bfloat16), wo_ref[0],
                preferred_element_type=jnp.float32) + bo_ref[0]
    x2 = x2 + a                                                       # residual in f32

    # --- MLP sub-block (pre-LN, quick-GELU) ----------------------------------
    h2 = _ln(x2, ln2g_ref[0], ln2b_ref[0])
    m1 = jnp.dot(h2.astype(jnp.bfloat16), w1_ref[0],
                 preferred_element_type=jnp.float32) + b1_ref[0]
    m1 = m1 * jax.nn.sigmoid(1.702 * m1)                              # quick_gelu, f32
    m2 = jnp.dot(m1.astype(jnp.bfloat16), w2_ref[0],
                 preferred_element_type=jnp.float32) + b2_ref[0]
    x2 = x2 + m2

    act_ref[...] = x2.reshape(Bt, S, H)

    # fused final-LayerNorm epilogue -> write the output block exactly once
    @pl.when(l == last)
    def _():
        o_ref[...] = _ln(x2, lnfg_ref[...], lnfb_ref[...]).reshape(Bt, S, H)


def clip_encoder_stack(x, stacked, lnf_g, lnf_b):
    """All stacked encoder layers + final LayerNorm in ONE pallas_call.

    x: (B, S, H) f32 with S a multiple of 8; stacked[*] have a leading layer axis.
    """
    B, S, H = x.shape
    L = stacked["wqkv"].shape[0]
    Bt = B   # whole (tiny) batch per grid step; weights are streamed over layers.
    # TODO(synk): on v7x with larger batches pick Bt < B so the "parallel" batch
    # axis has >= 2 steps to shard across the two TensorCores.

    act_spec = pl.BlockSpec((Bt, S, H), lambda bb, l: (bb, 0, 0))

    def layer_spec(arr):        # per-layer weight slab, selected by layer index
        return pl.BlockSpec((1,) + arr.shape[1:], lambda bb, l: (l, 0, 0))

    def const_spec(arr):        # final-LN params, resident for the whole call
        return pl.BlockSpec(arr.shape, lambda bb, l: (0, 0))

    names = ("ln1_g", "ln1_b", "wqkv", "bqkv", "wo", "bo",
             "ln2_g", "ln2_b", "w1", "b1", "w2", "b2")
    layer_args = [stacked[n] for n in names]

    return pl.pallas_call(
        _clip_stack_kernel,
        out_shape=jax.ShapeDtypeStruct((B, S, H), jnp.float32),
        grid=(pl.cdiv(B, Bt), L),
        in_specs=([act_spec] + [layer_spec(a) for a in layer_args]
                  + [const_spec(lnf_g), const_spec(lnf_b)]),
        out_specs=act_spec,
        scratch_shapes=[pltpu.VMEM((Bt, S, H), jnp.float32),     # activation carry
                        pltpu.VMEM((Bt * S, H), jnp.float32)],   # merged attn heads
        compiler_params=pltpu.CompilerParams(
            dimension_semantics=("parallel", "arbitrary"),
            # At the real SD1 config (hidden=768, intermediate=3072, bf16 weights)
            # the double-buffered per-layer weight slabs need ~40-48 MiB; on v7x
            # set vmem_limit_bytes=48 << 20 (above the 32 MiB scoped default,
            # below the 64 MiB physical VMEM).  The toy config fits the default.
        ),
    )(x, *layer_args, lnf_g, lnf_b)


def _final_ln_kernel(x_ref, g_ref, b_ref, o_ref):
    o_ref[...] = _ln(x_ref[...], g_ref[...], b_ref[...])


def final_layer_norm(x2d, g, b):
    """Standalone whole-slab LayerNorm (only used for the 'hidden' layer_idx=0
    corner case; otherwise the final LN is fused into the encoder kernel)."""
    M, H = x2d.shape
    return pl.pallas_call(
        _final_ln_kernel,
        out_shape=jax.ShapeDtypeStruct((M, H), jnp.float32),
    )(x2d, g, b)


# ------------------------------ model glue ---------------------------------

def init_params(key):
    def dense(k, shape, dtype=jnp.bfloat16):
        return (jax.random.normal(k, shape, jnp.float32) * 0.02).astype(dtype)

    keys = jax.random.split(key, 2 + N_LAYERS)
    per_layer = {n: [] for n in ("ln1_g", "ln1_b", "wqkv", "bqkv", "wo", "bo",
                                 "ln2_g", "ln2_b", "w1", "b1", "w2", "b2")}
    for l in range(N_LAYERS):
        ks = jax.random.split(keys[2 + l], 6)
        wq = dense(ks[0], (HIDDEN, HIDDEN))
        wk = dense(ks[1], (HIDDEN, HIDDEN))
        wv = dense(ks[2], (HIDDEN, HIDDEN))
        per_layer["ln1_g"].append(jnp.ones((1, HIDDEN), jnp.float32))
        per_layer["ln1_b"].append(jnp.zeros((1, HIDDEN), jnp.float32))
        # Q/K/V fused into a single (H, 3H) bf16 weight / (1, 3H) f32 bias
        per_layer["wqkv"].append(jnp.concatenate([wq, wk, wv], axis=1))
        per_layer["bqkv"].append(jnp.zeros((1, 3 * HIDDEN), jnp.float32))
        per_layer["wo"].append(dense(ks[3], (HIDDEN, HIDDEN)))
        per_layer["bo"].append(jnp.zeros((1, HIDDEN), jnp.float32))
        per_layer["ln2_g"].append(jnp.ones((1, HIDDEN), jnp.float32))
        per_layer["ln2_b"].append(jnp.zeros((1, HIDDEN), jnp.float32))
        per_layer["w1"].append(dense(ks[4], (HIDDEN, INTERMEDIATE)))
        per_layer["b1"].append(jnp.zeros((1, INTERMEDIATE), jnp.float32))
        per_layer["w2"].append(dense(ks[5], (INTERMEDIATE, HIDDEN)))
        per_layer["b2"].append(jnp.zeros((1, HIDDEN), jnp.float32))

    return {
        "tok_emb": dense(keys[0], (VOCAB, HIDDEN), jnp.float32),
        "pos_emb": dense(keys[1], (MAX_POS, HIDDEN), jnp.float32),
        "lnf_g": jnp.ones((1, HIDDEN), jnp.float32),
        "lnf_b": jnp.zeros((1, HIDDEN), jnp.float32),
        # per-layer params stacked with a leading layer axis for the fused kernel
        "layers": {k: jnp.stack(v, axis=0) for k, v in per_layer.items()},
    }


def sd1_clip_forward(tokens, params, layer="last", layer_idx=None,
                     eot_token_id=EOT_TOKEN):
    """Equivalent of SD1ClipModel.forward for integer token ids.

    tokens: (B, S) int32. Returns last_hidden_state (B, S, HIDDEN) for
    layer='last', pooled[:, None, :] for 'pooled', or the final-LN'd hidden
    state at `layer_idx` for 'hidden'.
    """
    # TODO(synk): set_up_textual_embeddings / encode_token_weights are host-side
    # Python dict & list surgery with no Pallas equivalent; only plain int token
    # ids are handled here.
    B, S = tokens.shape
    # TODO(synk): token/position embedding gather stays in plain JAX (no clean
    # rectangular-tile Pallas expression for a vocab gather at this scale).
    x = params["tok_emb"][tokens] + params["pos_emb"][:S][None, :, :]

    # pad the sequence to a multiple of 8 sublanes; real rows stay exact because
    # of the causal mask, and padded rows are sliced off below.
    S_pad = ((S + 7) // 8) * 8
    if S_pad != S:
        x = jnp.pad(x, ((0, 0), (0, S_pad - S), (0, 0)))

    stacked = params["layers"]
    n_total = stacked["wqkv"].shape[0]

    if layer == "hidden":
        assert layer_idx is not None
        # hidden_states[i] == output after i encoder layers (index 0 = embeddings)
        n_run = layer_idx if layer_idx >= 0 else n_total + 1 + layer_idx
        n_run = max(0, min(n_run, n_total))
    else:
        n_run = n_total

    if n_run == 0:
        z = final_layer_norm(x.reshape(B * S_pad, HIDDEN),
                             params["lnf_g"], params["lnf_b"])
        return z.reshape(B, S_pad, HIDDEN)[:, :S]

    run = {k: v[:n_run] for k, v in stacked.items()}
    z = clip_encoder_stack(x, run, params["lnf_g"], params["lnf_b"])[:, :S]

    if layer == "pooled":
        # CLIP pooled output: final-LN hidden state at the EOT token position
        # (argmax over the original, unpadded tokens).
        eot_pos = jnp.argmax((tokens == eot_token_id).astype(jnp.int32), axis=-1)
        pooled = z[jnp.arange(B), eot_pos]
        return pooled[:, None, :]
    return z   # 'last' and 'hidden'


if __name__ == "__main__":
    key = jax.random.PRNGKey(0)
    pkey, tkey = jax.random.split(key)
    params = init_params(pkey)

    B, S = 2, 8
    tokens = jax.random.randint(tkey, (B, S), 0, VOCAB, dtype=jnp.int32)

    out = sd1_clip_forward(tokens, params, layer="last")
    out = jax.block_until_ready(out)
    assert out.shape == (B, S, HIDDEN) and out.dtype == jnp.float32
    print("KERNEL_OK")
</pallas_src>

<mosaic_0001>
module attributes {stable_mosaic.version = 11 : i64} {
  func.func @_clip_stack_kernel(%arg0: i32, %arg1: i32, %arg2: memref<2x8x64xf32, #tpu.memory_space<vmem>>, %arg3: memref<1x1x64xf32, #tpu.memory_space<vmem>>, %arg4: memref<1x1x64xf32, #tpu.memory_space<vmem>>, %arg5: memref<1x64x192xbf16, #tpu.memory_space<vmem>>, %arg6: memref<1x1x192xf32, #tpu.memory_space<vmem>>, %arg7: memref<1x64x64xbf16, #tpu.memory_space<vmem>>, %arg8: memref<1x1x64xf32, #tpu.memory_space<vmem>>, %arg9: memref<1x1x64xf32, #tpu.memory_space<vmem>>, %arg10: memref<1x1x64xf32, #tpu.memory_space<vmem>>, %arg11: memref<1x64x256xbf16, #tpu.memory_space<vmem>>, %arg12: memref<1x1x256xf32, #tpu.memory_space<vmem>>, %arg13: memref<1x256x64xbf16, #tpu.memory_space<vmem>>, %arg14: memref<1x1x64xf32, #tpu.memory_space<vmem>>, %arg15: memref<1x64xf32, #tpu.memory_space<vmem>>, %arg16: memref<1x64xf32, #tpu.memory_space<vmem>>, %arg17: memref<2x8x64xf32, #tpu.memory_space<vmem>>, %arg18: memref<2x8x64xf32, #tpu.memory_space<vmem>>, %arg19: memref<16x64xf32, #tpu.memory_space<vmem>>) attributes {dimension_semantics = [#tpu.dimension_semantics<parallel>, #tpu.dimension_semantics<arbitrary>], iteration_bounds = array<i64: 1, 2>, scalar_prefetch = 0 : i64, scratch_operands = 2 : i64, tpu.core_type = #tpu.core_type<tc>, window_params = [{transform_indices = @transform_0, window_bounds = array<i64: 2, 8, 64>}, {transform_indices = @transform_1, window_bounds = array<i64: 1, 1, 64>}, {transform_indices = @transform_2, window_bounds = array<i64: 1, 1, 64>}, {transform_indices = @transform_3, window_bounds = array<i64: 1, 64, 192>}, {transform_indices = @transform_4, window_bounds = array<i64: 1, 1, 192>}, {transform_indices = @transform_5, window_bounds = array<i64: 1, 64, 64>}, {transform_indices = @transform_6, window_bounds = array<i64: 1, 1, 64>}, {transform_indices = @transform_7, window_bounds = array<i64: 1, 1, 64>}, {transform_indices = @transform_8, window_bounds = array<i64: 1, 1, 64>}, {transform_indices = @transform_9, window_bounds = array<i64: 1, 64, 256>}, {transform_indices = @transform_10, window_bounds = array<i64: 1, 1, 256>}, {transform_indices = @transform_11, window_bounds = array<i64: 1, 256, 64>}, {transform_indices = @transform_12, window_bounds = array<i64: 1, 1, 64>}, {pipeline_mode = #tpu.pipeline_mode<synchronous>, transform_indices = @transform_13, window_bounds = array<i64: 1, 64>}, {pipeline_mode = #tpu.pipeline_mode<synchronous>, transform_indices = @transform_14, window_bounds = array<i64: 1, 64>}, {transform_indices = @transform_15, window_bounds = array<i64: 2, 8, 64>}]} {
    %c0_i32 = arith.constant 0 : i32
    %0 = arith.cmpi eq, %arg1, %c0_i32 : i32
    %1 = arith.extui %0 : i1 to i32
    %c0_i32_0 = arith.constant 0 : i32
    %2 = arith.cmpi ne, %1, %c0_i32_0 : i32
    scf.if %2 {
      %c0_89 = arith.constant 0 : index
      %c0_90 = arith.constant 0 : index
      %c0_91 = arith.constant 0 : index
      %228 = vector.load %arg2[%c0_89, %c0_90, %c0_91] : memref<2x8x64xf32, #tpu.memory_space<vmem>>, vector<2x8x64xf32>
      %c0_92 = arith.constant 0 : index
      %c0_93 = arith.constant 0 : index
      %c0_94 = arith.constant 0 : index
      %229 = vector.load %arg18[%c0_92, %c0_93, %c0_94] : memref<2x8x64xf32, #tpu.memory_space<vmem>>, vector<2x8x64xf32>
      tpu.vector_store %arg18[%c0_92, %c0_93, %c0_94], %228 {strides = array<i32>} : memref<2x8x64xf32, #tpu.memory_space<vmem>>, vector<2x8x64xf32>,
    } else {
    }
    %c0 = arith.constant 0 : index
    %c0_1 = arith.constant 0 : index
    %c0_2 = arith.constant 0 : index
    %3 = vector.load %arg18[%c0, %c0_1, %c0_2] : memref<2x8x64xf32, #tpu.memory_space<vmem>>, vector<2x8x64xf32>
    %4 = vector.shape_cast %3 : vector<2x8x64xf32> to vector<16x64xf32>
    %c0_3 = arith.constant 0 : index
    %c0_4 = arith.constant 0 : index
    %c0_5 = arith.constant 0 : index
    %5 = vector.load %arg3[%c0_3, %c0_4, %c0_5] : memref<1x1x64xf32, #tpu.memory_space<vmem>>, vector<1x1x64xf32>
    %6 = vector.shape_cast %5 : vector<1x1x64xf32> to vector<1x64xf32>
    %c0_6 = arith.constant 0 : index
    %c0_7 = arith.constant 0 : index
    %c0_8 = arith.constant 0 : index
    %7 = vector.load %arg4[%c0_6, %c0_7, %c0_8] : memref<1x1x64xf32, #tpu.memory_space<vmem>>, vector<1x1x64xf32>
    %8 = vector.shape_cast %7 : vector<1x1x64xf32> to vector<1x64xf32>
    %cst = arith.constant dense<0.000000e+00> : vector<16xf32>
    %9 = vector.multi_reduction <add>, %4, %cst [1] : vector<16x64xf32> to vector<16xf32>
    %10 = vector.shape_cast %9 : vector<16xf32> to vector<16x1xf32>
    %cst_9 = arith.constant 6.400000e+01 : f32
    %11 = vector.broadcast %cst_9 : f32 to vector<16x1xf32>
    %12 = arith.divf %10, %11 : vector<16x1xf32>
    %13 = vector.broadcast %12 : vector<16x1xf32> to vector<16x64xf32>
    %14 = arith.subf %4, %13 : vector<16x64xf32>
    %15 = arith.mulf %14, %14 : vector<16x64xf32>
    %cst_10 = arith.constant dense<0.000000e+00> : vector<16xf32>
    %16 = vector.multi_reduction <add>, %15, %cst_10 [1] : vector<16x64xf32> to vector<16xf32>
    %17 = vector.shape_cast %16 : vector<16xf32> to vector<16x1xf32>
    %cst_11 = arith.constant 6.400000e+01 : f32
    %18 = vector.broadcast %cst_11 : f32 to vector<16x1xf32>
    %19 = arith.divf %17, %18 : vector<16x1xf32>
    %20 = vector.broadcast %12 : vector<16x1xf32> to vector<16x64xf32>
    %21 = arith.subf %4, %20 : vector<16x64xf32>
    %cst_12 = arith.constant 9.99999974E-6 : f32
    %22 = vector.broadcast %cst_12 : f32 to vector<16x1xf32>
    %23 = arith.addf %19, %22 : vector<16x1xf32>
    %24 = math.rsqrt %23 : vector<16x1xf32>
    %25 = vector.broadcast %24 : vector<16x1xf32> to vector<16x64xf32>
    %26 = arith.mulf %21, %25 : vector<16x64xf32>
    %27 = vector.broadcast %6 : vector<1x64xf32> to vector<16x64xf32>
    %28 = arith.mulf %26, %27 : vector<16x64xf32>
    %29 = vector.broadcast %8 : vector<1x64xf32> to vector<16x64xf32>
    %30 = arith.addf %28, %29 : vector<16x64xf32>
    %31 = arith.truncf %30 : vector<16x64xf32> to vector<16x64xbf16>
    %c0_13 = arith.constant 0 : index
    %c0_14 = arith.constant 0 : index
    %c0_15 = arith.constant 0 : index
    %32 = vector.load %arg5[%c0_13, %c0_14, %c0_15] : memref<1x64x192xbf16, #tpu.memory_space<vmem>>, vector<1x64x192xbf16>
    %33 = vector.shape_cast %32 : vector<1x64x192xbf16> to vector<64x192xbf16>
    %cst_16 = arith.constant dense<0.000000e+00> : vector<16x192xf32>
    %34 = tpu.matmul %31, %33, %cst_16 {dimension_numbers = #tpu.dot_dimension_numbers<[1], [0], [0], [1], [0, 0, 1, 1], [], []>} : vector<16x64xbf16>, vector<64x192xbf16>, vector<16x192xf32> -> vector<16x192xf32>
    %c0_17 = arith.constant 0 : index
    %c0_18 = arith.constant 0 : index
    %c0_19 = arith.constant 0 : index
    %35 = vector.load %arg6[%c0_17, %c0_18, %c0_19] : memref<1x1x192xf32, #tpu.memory_space<vmem>>, vector<1x1x192xf32>
    %36 = vector.shape_cast %35 : vector<1x1x192xf32> to vector<1x192xf32>
    %37 = vector.broadcast %36 : vector<1x192xf32> to vector<16x192xf32>
    %38 = arith.addf %34, %37 : vector<16x192xf32>
    %39 = tpu.iota {dimensions = array<i32: 0>} : vector<8x8xi32>
    %40 = tpu.iota {dimensions = array<i32: 1>} : vector<8x8xi32>
    %41 = arith.cmpi sle, %40, %39 : vector<8x8xi32>
    %42 = vector.extract_strided_slice %38 {offsets = [0, 0], sizes = [16, 16], strides = [1, 1]} : vector<16x192xf32> to vector<16x16xf32>
    %cst_20 = arith.constant 2.500000e-01 : f32
    %43 = vector.broadcast %cst_20 : f32 to vector<16x16xf32>
    %44 = arith.mulf %42, %43 : vector<16x16xf32>
    %45 = vector.shape_cast %44 : vector<16x16xf32> to vector<2x8x16xf32>
    %46 = vector.extract_strided_slice %38 {offsets = [0, 64], sizes = [16, 16], strides = [1, 1]} : vector<16x192xf32> to vector<16x16xf32>
    %47 = vector.shape_cast %46 : vector<16x16xf32> to vector<2x8x16xf32>
    %48 = vector.extract_strided_slice %38 {offsets = [0, 128], sizes = [16, 16], strides = [1, 1]} : vector<16x192xf32> to vector<16x16xf32>
    %49 = vector.shape_cast %48 : vector<16x16xf32> to vector<2x8x16xf32>
    %50 = arith.truncf %45 : vector<2x8x16xf32> to vector<2x8x16xbf16>
    %51 = arith.truncf %47 : vector<2x8x16xf32> to vector<2x8x16xbf16>
    "tpu.trace_start"() <{level = 10 : i32, message = "bqd,bkd->bqk"}> : () -> ()
    %cst_21 = arith.constant dense<0.000000e+00> : vector<2x8x8xf32>
    %52 = tpu.matmul %50, %51, %cst_21 {dimension_numbers = #tpu.dot_dimension_numbers<[2], [2], [1], [1], [0, 0, 0, 1, 1, 1], [0], [0]>} : vector<2x8x16xbf16>, vector<2x8x16xbf16>, vector<2x8x8xf32> -> vector<2x8x8xf32>
    %cst_22 = arith.constant -1.000000e+09 : f32
    "tpu.trace_stop"() : () -> ()
    %53 = vector.shape_cast %41 : vector<8x8xi1> to vector<1x8x8xi1>
    %54 = vector.broadcast %53 : vector<1x8x8xi1> to vector<2x8x8xi1>
    %55 = vector.broadcast %cst_22 : f32 to vector<2x8x8xf32>
    %56 = arith.select %54, %52, %55 : vector<2x8x8xi1>, vector<2x8x8xf32>
    %cst_23 = arith.constant dense<0xFF800000> : vector<2x8xf32>
    %57 = vector.multi_reduction <maximumf>, %56, %cst_23 [2] : vector<2x8x8xf32> to vector<2x8xf32>
    %58 = vector.shape_cast %57 : vector<2x8xf32> to vector<2x8x1xf32>
    %59 = vector.broadcast %58 : vector<2x8x1xf32> to vector<2x8x8xf32>
    %60 = arith.subf %56, %59 : vector<2x8x8xf32>
    %61 = math.exp %60 : vector<2x8x8xf32>
    %cst_24 = arith.constant dense<0.000000e+00> : vector<2x8xf32>
    %62 = vector.multi_reduction <add>, %61, %cst_24 [2] : vector<2x8x8xf32> to vector<2x8xf32>
    %63 = vector.shape_cast %62 : vector<2x8xf32> to vector<2x8x1xf32>
    %64 = tpu.reciprocal %63 {approx = true} : vector<2x8x1xf32> -> vector<2x8x1xf32>
    %65 = vector.broadcast %64 : vector<2x8x1xf32> to vector<2x8x8xf32>
    %66 = arith.mulf %61, %65 : vector<2x8x8xf32>
    %67 = arith.truncf %66 : vector<2x8x8xf32> to vector<2x8x8xbf16>
    %68 = arith.truncf %49 : vector<2x8x16xf32> to vector<2x8x16xbf16>
    "tpu.trace_start"() <{level = 10 : i32, message = "bqk,bkd->bqd"}> : () -> ()
    %cst_25 = arith.constant dense<0.000000e+00> : vector<2x8x16xf32>
    %69 = tpu.matmul %67, %68, %cst_25 {dimension_numbers = #tpu.dot_dimension_numbers<[2], [1], [1], [2], [0, 0, 0, 1, 1, 2], [0], [0]>} : vector<2x8x8xbf16>, vector<2x8x16xbf16>, vector<2x8x16xf32> -> vector<2x8x16xf32>
    "tpu.trace_stop"() : () -> ()
    %70 = vector.shape_cast %69 : vector<2x8x16xf32> to vector<16x16xf32>
    %c0_26 = arith.constant 0 : index
    %c0_27 = arith.constant 0 : index
    %71 = vector.load %arg19[%c0_26, %c0_27] : memref<16x64xf32, #tpu.memory_space<vmem>>, vector<16x16xf32>
    tpu.vector_store %arg19[%c0_26, %c0_27], %70 {strides = array<i32>} : memref<16x64xf32, #tpu.memory_space<vmem>>, vector<16x16xf32>,
    %72 = vector.extract_strided_slice %38 {offsets = [0, 16], sizes = [16, 16], strides = [1, 1]} : vector<16x192xf32> to vector<16x16xf32>
    %cst_28 = arith.constant 2.500000e-01 : f32
    %73 = vector.broadcast %cst_28 : f32 to vector<16x16xf32>
    %74 = arith.mulf %72, %73 : vector<16x16xf32>
    %75 = vector.shape_cast %74 : vector<16x16xf32> to vector<2x8x16xf32>
    %76 = vector.extract_strided_slice %38 {offsets = [0, 80], sizes = [16, 16], strides = [1, 1]} : vector<16x192xf32> to vector<16x16xf32>
    %77 = vector.shape_cast %76 : vector<16x16xf32> to vector<2x8x16xf32>
    %78 = vector.extract_strided_slice %38 {offsets = [0, 144], sizes = [16, 16], strides = [1, 1]} : vector<16x192xf32> to vector<16x16xf32>
    %79 = vector.shape_cast %78 : vector<16x16xf32> to vector<2x8x16xf32>
    %80 = arith.truncf %75 : vector<2x8x16xf32> to vector<2x8x16xbf16>
    %81 = arith.truncf %77 : vector<2x8x16xf32> to vector<2x8x16xbf16>
    "tpu.trace_start"() <{level = 10 : i32, message = "bqd,bkd->bqk"}> : () -> ()
    %cst_29 = arith.constant dense<0.000000e+00> : vector<2x8x8xf32>
    %82 = tpu.matmul %80, %81, %cst_29 {dimension_numbers = #tpu.dot_dimension_numbers<[2], [2], [1], [1], [0, 0, 0, 1, 1, 1], [0], [0]>} : vector<2x8x16xbf16>, vector<2x8x16xbf16>, vector<2x8x8xf32> -> vector<2x8x8xf32>
    %cst_30 = arith.constant -1.000000e+09 : f32
    "tpu.trace_stop"() : () -> ()
    %83 = vector.shape_cast %41 : vector<8x8xi1> to vector<1x8x8xi1>
    %84 = vector.broadcast %83 : vector<1x8x8xi1> to vector<2x8x8xi1>
    %85 = vector.broadcast %cst_30 : f32 to vector<2x8x8xf32>
    %86 = arith.select %84, %82, %85 : vector<2x8x8xi1>, vector<2x8x8xf32>
    %cst_31 = arith.constant dense<0xFF800000> : vector<2x8xf32>
    %87 = vector.multi_reduction <maximumf>, %86, %cst_31 [2] : vector<2x8x8xf32> to vector<2x8xf32>
    %88 = vector.shape_cast %87 : vector<2x8xf32> to vector<2x8x1xf32>
    %89 = vector.broadcast %88 : vector<2x8x1xf32> to vector<2x8x8xf32>
    %90 = arith.subf %86, %89 : vector<2x8x8xf32>
    %91 = math.exp %90 : vector<2x8x8xf32>
    %cst_32 = arith.constant dense<0.000000e+00> : vector<2x8xf32>
    %92 = vector.multi_reduction <add>, %91, %cst_32 [2] : vector<2x8x8xf32> to vector<2x8xf32>
    %93 = vector.shape_cast %92 : vector<2x8xf32> to vector<2x8x1xf32>
    %94 = tpu.reciprocal %93 {approx = true} : vector<2x8x1xf32> -> vector<2x8x1xf32>
    %95 = vector.broadcast %94 : vector<2x8x1xf32> to vector<2x8x8xf32>
    %96 = arith.mulf %91, %95 : vector<2x8x8xf32>
    %97 = arith.truncf %96 : vector<2x8x8xf32> to vector<2x8x8xbf16>
    %98 = arith.truncf %79 : vector<2x8x16xf32> to vector<2x8x16xbf16>
    "tpu.trace_start"() <{level = 10 : i32, message = "bqk,bkd->bqd"}> : () -> ()
    %cst_33 = arith.constant dense<0.000000e+00> : vector<2x8x16xf32>
    %99 = tpu.matmul %97, %98, %cst_33 {dimension_numbers = #tpu.dot_dimension_numbers<[2], [1], [1], [2], [0, 0, 0, 1, 1, 2], [0], [0]>} : vector<2x8x8xbf16>, vector<2x8x16xbf16>, vector<2x8x16xf32> -> vector<2x8x16xf32>
    "tpu.trace_stop"() : () -> ()
    %100 = vector.shape_cast %99 : vector<2x8x16xf32> to vector<16x16xf32>
    %c0_34 = arith.constant 0 : index
    %c16 = arith.constant 16 : index
    %101 = vector.load %arg19[%c0_34, %c16] : memref<16x64xf32, #tpu.memory_space<vmem>>, vector<16x16xf32>
    tpu.vector_store %arg19[%c0_34, %c16], %100 {strides = array<i32>} : memref<16x64xf32, #tpu.memory_space<vmem>>, vector<16x16xf32>,
    %102 = vector.extract_strided_slice %38 {offsets = [0, 32], sizes = [16, 16], strides = [1, 1]} : vector<16x192xf32> to vector<16x16xf32>
    %cst_35 = arith.constant 2.500000e-01 : f32
    %103 = vector.broadcast %cst_35 : f32 to vector<16x16xf32>
    %104 = arith.mulf %102, %103 : vector<16x16xf32>
    %105 = vector.shape_cast %104 : vector<16x16xf32> to vector<2x8x16xf32>
    %106 = vector.extract_strided_slice %38 {offsets = [0, 96], sizes = [16, 16], strides = [1, 1]} : vector<16x192xf32> to vector<16x16xf32>
    %107 = vector.shape_cast %106 : vector<16x16xf32> to vector<2x8x16xf32>
    %108 = vector.extract_strided_slice %38 {offsets = [0, 160], sizes = [16, 16], strides = [1, 1]} : vector<16x192xf32> to vector<16x16xf32>
    %109 = vector.shape_cast %108 : vector<16x16xf32> to vector<2x8x16xf32>
    %110 = arith.truncf %105 : vector<2x8x16xf32> to vector<2x8x16xbf16>
    %111 = arith.truncf %107 : vector<2x8x16xf32> to vector<2x8x16xbf16>
    "tpu.trace_start"() <{level = 10 : i32, message = "bqd,bkd->bqk"}> : () -> ()
    %cst_36 = arith.constant dense<0.000000e+00> : vector<2x8x8xf32>
    %112 = tpu.matmul %110, %111, %cst_36 {dimension_numbers = #tpu.dot_dimension_numbers<[2], [2], [1], [1], [0, 0, 0, 1, 1, 1], [0], [0]>} : vector<2x8x16xbf16>, vector<2x8x16xbf16>, vector<2x8x8xf32> -> vector<2x8x8xf32>
    %cst_37 = arith.constant -1.000000e+09 : f32
    "tpu.trace_stop"() : () -> ()
    %113 = vector.shape_cast %41 : vector<8x8xi1> to vector<1x8x8xi1>
    %114 = vector.broadcast %113 : vector<1x8x8xi1> to vector<2x8x8xi1>
    %115 = vector.broadcast %cst_37 : f32 to vector<2x8x8xf32>
    %116 = arith.select %114, %112, %115 : vector<2x8x8xi1>, vector<2x8x8xf32>
    %cst_38 = arith.constant dense<0xFF800000> : vector<2x8xf32>
    %117 = vector.multi_reduction <maximumf>, %116, %cst_38 [2] : vector<2x8x8xf32> to vector<2x8xf32>
    %118 = vector.shape_cast %117 : vector<2x8xf32> to vector<2x8x1xf32>
    %119 = vector.broadcast %118 : vector<2x8x1xf32> to vector<2x8x8xf32>
    %120 = arith.subf %116, %119 : vector<2x8x8xf32>
    %121 = math.exp %120 : vector<2x8x8xf32>
    %cst_39 = arith.constant dense<0.000000e+00> : vector<2x8xf32>
    %122 = vector.multi_reduction <add>, %121, %cst_39 [2] : vector<2x8x8xf32> to vector<2x8xf32>
    %123 = vector.shape_cast %122 : vector<2x8xf32> to vector<2x8x1xf32>
    %124 = tpu.reciprocal %123 {approx = true} : vector<2x8x1xf32> -> vector<2x8x1xf32>
    %125 = vector.broadcast %124 : vector<2x8x1xf32> to vector<2x8x8xf32>
    %126 = arith.mulf %121, %125 : vector<2x8x8xf32>
    %127 = arith.truncf %126 : vector<2x8x8xf32> to vector<2x8x8xbf16>
    %128 = arith.truncf %109 : vector<2x8x16xf32> to vector<2x8x16xbf16>
    "tpu.trace_start"() <{level = 10 : i32, message = "bqk,bkd->bqd"}> : () -> ()
    %cst_40 = arith.constant dense<0.000000e+00> : vector<2x8x16xf32>
    %129 = tpu.matmul %127, %128, %cst_40 {dimension_numbers = #tpu.dot_dimension_numbers<[2], [1], [1], [2], [0, 0, 0, 1, 1, 2], [0], [0]>} : vector<2x8x8xbf16>, vector<2x8x16xbf16>, vector<2x8x16xf32> -> vector<2x8x16xf32>
    "tpu.trace_stop"() : () -> ()
    %130 = vector.shape_cast %129 : vector<2x8x16xf32> to vector<16x16xf32>
    %c0_41 = arith.constant 0 : index
    %c32 = arith.constant 32 : index
    %131 = vector.load %arg19[%c0_41, %c32] : memref<16x64xf32, #tpu.memory_space<vmem>>, vector<16x16xf32>
    tpu.vector_store %arg19[%c0_41, %c32], %130 {strides = array<i32>} : memref<16x64xf32, #tpu.memory_space<vmem>>, vector<16x16xf32>,
    %132 = vector.extract_strided_slice %38 {offsets = [0, 48], sizes = [16, 16], strides = [1, 1]} : vector<16x192xf32> to vector<16x16xf32>
    %cst_42 = arith.constant 2.500000e-01 : f32
    %133 = vector.broadcast %cst_42 : f32 to vector<16x16xf32>
    %134 = arith.mulf %132, %133 : vector<16x16xf32>
    %135 = vector.shape_cast %134 : vector<16x16xf32> to vector<2x8x16xf32>
    %136 = vector.extract_strided_slice %38 {offsets = [0, 112], sizes = [16, 16], strides = [1, 1]} : vector<16x192xf32> to vector<16x16xf32>
    %137 = vector.shape_cast %136 : vector<16x16xf32> to vector<2x8x16xf32>
    %138 = vector.extract_strided_slice %38 {offsets = [0, 176], sizes = [16, 16], strides = [1, 1]} : vector<16x192xf32> to vector<16x16xf32>
    %139 = vector.shape_cast %138 : vector<16x16xf32> to vector<2x8x16xf32>
    %140 = arith.truncf %135 : vector<2x8x16xf32> to vector<2x8x16xbf16>
    %141 = arith.truncf %137 : vector<2x8x16xf32> to vector<2x8x16xbf16>
    "tpu.trace_start"() <{level = 10 : i32, message = "bqd,bkd->bqk"}> : () -> ()
    %cst_43 = arith.constant dense<0.000000e+00> : vector<2x8x8xf32>
    %142 = tpu.matmul %140, %141, %cst_43 {dimension_numbers = #tpu.dot_dimension_numbers<[2], [2], [1], [1], [0, 0, 0, 1, 1, 1], [0], [0]>} : vector<2x8x16xbf16>, vector<2x8x16xbf16>, vector<2x8x8xf32> -> vector<2x8x8xf32>
    %cst_44 = arith.constant -1.000000e+09 : f32
    "tpu.trace_stop"() : () -> ()
    %143 = vector.shape_cast %41 : vector<8x8xi1> to vector<1x8x8xi1>
    %144 = vector.broadcast %143 : vector<1x8x8xi1> to vector<2x8x8xi1>
    %145 = vector.broadcast %cst_44 : f32 to vector<2x8x8xf32>
    %146 = arith.select %144, %142, %145 : vector<2x8x8xi1>, vector<2x8x8xf32>
    %cst_45 = arith.constant dense<0xFF800000> : vector<2x8xf32>
    %147 = vector.multi_reduction <maximumf>, %146, %cst_45 [2] : vector<2x8x8xf32> to vector<2x8xf32>
    %148 = vector.shape_cast %147 : vector<2x8xf32> to vector<2x8x1xf32>
    %149 = vector.broadcast %148 : vector<2x8x1xf32> to vector<2x8x8xf32>
    %150 = arith.subf %146, %149 : vector<2x8x8xf32>
    %151 = math.exp %150 : vector<2x8x8xf32>
    %cst_46 = arith.constant dense<0.000000e+00> : vector<2x8xf32>
    %152 = vector.multi_reduction <add>, %151, %cst_46 [2] : vector<2x8x8xf32> to vector<2x8xf32>
    %153 = vector.shape_cast %152 : vector<2x8xf32> to vector<2x8x1xf32>
    %154 = tpu.reciprocal %153 {approx = true} : vector<2x8x1xf32> -> vector<2x8x1xf32>
    %155 = vector.broadcast %154 : vector<2x8x1xf32> to vector<2x8x8xf32>
    %156 = arith.mulf %151, %155 : vector<2x8x8xf32>
    %157 = arith.truncf %156 : vector<2x8x8xf32> to vector<2x8x8xbf16>
    %158 = arith.truncf %139 : vector<2x8x16xf32> to vector<2x8x16xbf16>
    "tpu.trace_start"() <{level = 10 : i32, message = "bqk,bkd->bqd"}> : () -> ()
    %cst_47 = arith.constant dense<0.000000e+00> : vector<2x8x16xf32>
    %159 = tpu.matmul %157, %158, %cst_47 {dimension_numbers = #tpu.dot_dimension_numbers<[2], [1], [1], [2], [0, 0, 0, 1, 1, 2], [0], [0]>} : vector<2x8x8xbf16>, vector<2x8x16xbf16>, vector<2x8x16xf32> -> vector<2x8x16xf32>
    "tpu.trace_stop"() : () -> ()
    %160 = vector.shape_cast %159 : vector<2x8x16xf32> to vector<16x16xf32>
    %c0_48 = arith.constant 0 : index
    %c48 = arith.constant 48 : index
    %161 = vector.load %arg19[%c0_48, %c48] : memref<16x64xf32, #tpu.memory_space<vmem>>, vector<16x16xf32>
    tpu.vector_store %arg19[%c0_48, %c48], %160 {strides = array<i32>} : memref<16x64xf32, #tpu.memory_space<vmem>>, vector<16x16xf32>,
    %c0_49 = arith.constant 0 : index
    %c0_50 = arith.constant 0 : index
    %162 = vector.load %arg19[%c0_49, %c0_50] : memref<16x64xf32, #tpu.memory_space<vmem>>, vector<16x64xf32>
    %163 = arith.truncf %162 : vector<16x64xf32> to vector<16x64xbf16>
    %c0_51 = arith.constant 0 : index
    %c0_52 = arith.constant 0 : index
    %c0_53 = arith.constant 0 : index
    %164 = vector.load %arg7[%c0_51, %c0_52, %c0_53] : memref<1x64x64xbf16, #tpu.memory_space<vmem>>, vector<1x64x64xbf16>
    %165 = vector.shape_cast %164 : vector<1x64x64xbf16> to vector<64x64xbf16>
    %cst_54 = arith.constant dense<0.000000e+00> : vector<16x64xf32>
    %166 = tpu.matmul %163, %165, %cst_54 {dimension_numbers = #tpu.dot_dimension_numbers<[1], [0], [0], [1], [0, 0, 1, 1], [], []>} : vector<16x64xbf16>, vector<64x64xbf16>, vector<16x64xf32> -> vector<16x64xf32>
    %c0_55 = arith.constant 0 : index
    %c0_56 = arith.constant 0 : index
    %c0_57 = arith.constant 0 : index
    %167 = vector.load %arg8[%c0_55, %c0_56, %c0_57] : memref<1x1x64xf32, #tpu.memory_space<vmem>>, vector<1x1x64xf32>
    %168 = vector.shape_cast %167 : vector<1x1x64xf32> to vector<1x64xf32>
    %169 = vector.broadcast %168 : vector<1x64xf32> to vector<16x64xf32>
    %170 = arith.addf %166, %169 : vector<16x64xf32>
    %171 = arith.addf %4, %170 : vector<16x64xf32>
    %c0_58 = arith.constant 0 : index
    %c0_59 = arith.constant 0 : index
    %c0_60 = arith.constant 0 : index
    %172 = vector.load %arg9[%c0_58, %c0_59, %c0_60] : memref<1x1x64xf32, #tpu.memory_space<vmem>>, vector<1x1x64xf32>
    %173 = vector.shape_cast %172 : vector<1x1x64xf32> to vector<1x64xf32>
    %c0_61 = arith.constant 0 : index
    %c0_62 = arith.constant 0 : index
    %c0_63 = arith.constant 0 : index
    %174 = vector.load %arg10[%c0_61, %c0_62, %c0_63] : memref<1x1x64xf32, #tpu.memory_space<vmem>>, vector<1x1x64xf32>
    %175 = vector.shape_cast %174 : vector<1x1x64xf32> to vector<1x64xf32>
    %cst_64 = arith.constant dense<0.000000e+00> : vector<16xf32>
    %176 = vector.multi_reduction <add>, %171, %cst_64 [1] : vector<16x64xf32> to vector<16xf32>
    %177 = vector.shape_cast %176 : vector<16xf32> to vector<16x1xf32>
    %cst_65 = arith.constant 6.400000e+01 : f32
    %178 = vector.broadcast %cst_65 : f32 to vector<16x1xf32>
    %179 = arith.divf %177, %178 : vector<16x1xf32>
    %180 = vector.broadcast %179 : vector<16x1xf32> to vector<16x64xf32>
    %181 = arith.subf %171, %180 : vector<16x64xf32>
    %182 = arith.mulf %181, %181 : vector<16x64xf32>
    %cst_66 = arith.constant dense<0.000000e+00> : vector<16xf32>
    %183 = vector.multi_reduction <add>, %182, %cst_66 [1] : vector<16x64xf32> to vector<16xf32>
    %184 = vector.shape_cast %183 : vector<16xf32> to vector<16x1xf32>
    %cst_67 = arith.constant 6.400000e+01 : f32
    %185 = vector.broadcast %cst_67 : f32 to vector<16x1xf32>
    %186 = arith.divf %184, %185 : vector<16x1xf32>
    %187 = vector.broadcast %179 : vector<16x1xf32> to vector<16x64xf32>
    %188 = arith.subf %171, %187 : vector<16x64xf32>
    %cst_68 = arith.constant 9.99999974E-6 : f32
    %189 = vector.broadcast %cst_68 : f32 to vector<16x1xf32>
    %190 = arith.addf %186, %189 : vector<16x1xf32>
    %191 = math.rsqrt %190 : vector<16x1xf32>
    %192 = vector.broadcast %191 : vector<16x1xf32> to vector<16x64xf32>
    %193 = arith.mulf %188, %192 : vector<16x64xf32>
    %194 = vector.broadcast %173 : vector<1x64xf32> to vector<16x64xf32>
    %195 = arith.mulf %193, %194 : vector<16x64xf32>
    %196 = vector.broadcast %175 : vector<1x64xf32> to vector<16x64xf32>
    %197 = arith.addf %195, %196 : vector<16x64xf32>
    %198 = arith.truncf %197 : vector<16x64xf32> to vector<16x64xbf16>
    %c0_69 = arith.constant 0 : index
    %c0_70 = arith.constant 0 : index
    %c0_71 = arith.constant 0 : index
    %199 = vector.load %arg11[%c0_69, %c0_70, %c0_71] : memref<1x64x256xbf16, #tpu.memory_space<vmem>>, vector<1x64x256xbf16>
    %200 = vector.shape_cast %199 : vector<1x64x256xbf16> to vector<64x256xbf16>
    %cst_72 = arith.constant dense<0.000000e+00> : vector<16x256xf32>
    %201 = tpu.matmul %198, %200, %cst_72 {dimension_numbers = #tpu.dot_dimension_numbers<[1], [0], [0], [1], [0, 0, 1, 1], [], []>} : vector<16x64xbf16>, vector<64x256xbf16>, vector<16x256xf32> -> vector<16x256xf32>
    %c0_73 = arith.constant 0 : index
    %c0_74 = arith.constant 0 : index
    %c0_75 = arith.constant 0 : index
    %202 = vector.load %arg12[%c0_73, %c0_74, %c0_75] : memref<1x1x256xf32, #tpu.memory_space<vmem>>, vector<1x1x256xf32>
    %203 = vector.shape_cast %202 : vector<1x1x256xf32> to vector<1x256xf32>
    %204 = vector.broadcast %203 : vector<1x256xf32> to vector<16x256xf32>
    %205 = arith.addf %201, %204 : vector<16x256xf32>
    %cst_76 = arith.constant 1.702000e+00 : f32
    %206 = vector.broadcast %cst_76 : f32 to vector<16x256xf32>
    %207 = arith.mulf %206, %205 : vector<16x256xf32>
    %208 = arith.negf %207 : vector<16x256xf32>
    %209 = math.exp %208 : vector<16x256xf32>
    %cst_77 = arith.constant 1.000000e+00 : f32
    %210 = vector.broadcast %cst_77 : f32 to vector<16x256xf32>
    %211 = arith.addf %210, %209 : vector<16x256xf32>
    %212 = arith.divf %210, %211 : vector<16x256xf32>
    %213 = arith.mulf %205, %212 : vector<16x256xf32>
    %214 = arith.truncf %213 : vector<16x256xf32> to vector<16x256xbf16>
    %c0_78 = arith.constant 0 : index
    %c0_79 = arith.constant 0 : index
    %c0_80 = arith.constant 0 : index
    %215 = vector.load %arg13[%c0_78, %c0_79, %c0_80] : memref<1x256x64xbf16, #tpu.memory_space<vmem>>, vector<1x256x64xbf16>
    %216 = vector.shape_cast %215 : vector<1x256x64xbf16> to vector<256x64xbf16>
    %cst_81 = arith.constant dense<0.000000e+00> : vector<16x64xf32>
    %217 = tpu.matmul %214, %216, %cst_81 {dimension_numbers = #tpu.dot_dimension_numbers<[1], [0], [0], [1], [0, 0, 1, 1], [], []>} : vector<16x256xbf16>, vector<256x64xbf16>, vector<16x64xf32> -> vector<16x64xf32>
    %c0_82 = arith.constant 0 : index
    %c0_83 = arith.constant 0 : index
    %c0_84 = arith.constant 0 : index
    %218 = vector.load %arg14[%c0_82, %c0_83, %c0_84] : memref<1x1x64xf32, #tpu.memory_space<vmem>>, vector<1x1x64xf32>
    %219 = vector.shape_cast %218 : vector<1x1x64xf32> to vector<1x64xf32>
    %220 = vector.broadcast %219 : vector<1x64xf32> to vector<16x64xf32>
    %221 = arith.addf %217, %220 : vector<16x64xf32>
    %222 = arith.addf %171, %221 : vector<16x64xf32>
    %223 = vector.shape_cast %222 : vector<16x64xf32> to vector<2x8x64xf32>
    %c0_85 = arith.constant 0 : index
    %c0_86 = arith.constant 0 : index
    %c0_87 = arith.constant 0 : index
    %224 = vector.load %arg18[%c0_85, %c0_86, %c0_87] : memref<2x8x64xf32, #tpu.memory_space<vmem>>, vector<2x8x64xf32>
    tpu.vector_store %arg18[%c0_85, %c0_86, %c0_87], %223 {strides = array<i32>} : memref<2x8x64xf32, #tpu.memory_space<vmem>>, vector<2x8x64xf32>,
    %c1_i32 = arith.constant 1 : i32
    %225 = arith.cmpi eq, %arg1, %c1_i32 : i32
    %226 = arith.extui %225 : i1 to i32
    %c0_i32_88 = arith.constant 0 : i32
    %227 = arith.cmpi ne, %226, %c0_i32_88 : i32
    scf.if %227 {
      %c0_89 = arith.constant 0 : index
      %c0_90 = arith.constant 0 : index
      %228 = vector.load %arg15[%c0_89, %c0_90] : memref<1x64xf32, #tpu.memory_space<vmem>>, vector<1x64xf32>
      %c0_91 = arith.constant 0 : index
      %c0_92 = arith.constant 0 : index
      %229 = vector.load %arg16[%c0_91, %c0_92] : memref<1x64xf32, #tpu.memory_space<vmem>>, vector<1x64xf32>
      %cst_93 = arith.constant dense<0.000000e+00> : vector<16xf32>
      %230 = vector.multi_reduction <add>, %222, %cst_93 [1] : vector<16x64xf32> to vector<16xf32>
      %231 = vector.shape_cast %230 : vector<16xf32> to vector<16x1xf32>
      %cst_94 = arith.constant 6.400000e+01 : f32
      %232 = vector.broadcast %cst_94 : f32 to vector<16x1xf32>
      %233 = arith.divf %231, %232 : vector<16x1xf32>
      %234 = vector.broadcast %233 : vector<16x1xf32> to vector<16x64xf32>
      %235 = arith.subf %222, %234 : vector<16x64xf32>
      %236 = arith.mulf %235, %235 : vector<16x64xf32>
      %cst_95 = arith.constant dense<0.000000e+00> : vector<16xf32>
      %237 = vector.multi_reduction <add>, %236, %cst_95 [1] : vector<16x64xf32> to vector<16xf32>
      %238 = vector.shape_cast %237 : vector<16xf32> to vector<16x1xf32>
      %cst_96 = arith.constant 6.400000e+01 : f32
      %239 = vector.broadcast %cst_96 : f32 to vector<16x1xf32>
      %240 = arith.divf %238, %239 : vector<16x1xf32>
      %241 = vector.broadcast %233 : vector<16x1xf32> to vector<16x64xf32>
      %242 = arith.subf %222, %241 : vector<16x64xf32>
      %cst_97 = arith.constant 9.99999974E-6 : f32
      %243 = vector.broadcast %cst_97 : f32 to vector<16x1xf32>
      %244 = arith.addf %240, %243 : vector<16x1xf32>
      %245 = math.rsqrt %244 : vector<16x1xf32>
      %246 = vector.broadcast %245 : vector<16x1xf32> to vector<16x64xf32>
      %247 = arith.mulf %242, %246 : vector<16x64xf32>
      %248 = vector.broadcast %228 : vector<1x64xf32> to vector<16x64xf32>
      %249 = arith.mulf %247, %248 : vector<16x64xf32>
      %250 = vector.broadcast %229 : vector<1x64xf32> to vector<16x64xf32>
      %251 = arith.addf %249, %250 : vector<16x64xf32>
      %252 = vector.shape_cast %251 : vector<16x64xf32> to vector<2x8x64xf32>
      %c0_98 = arith.constant 0 : index
      %c0_99 = arith.constant 0 : index
      %c0_100 = arith.constant 0 : index
      %253 = vector.load %arg17[%c0_98, %c0_99, %c0_100] : memref<2x8x64xf32, #tpu.memory_space<vmem>>, vector<2x8x64xf32>
      tpu.vector_store %arg17[%c0_98, %c0_99, %c0_100], %252 {strides = array<i32>} : memref<2x8x64xf32, #tpu.memory_space<vmem>>, vector<2x8x64xf32>,
    } else {
    }
    return
  }
  func.func @transform_0(%arg0: i32, %arg1: i32) -> (i32, i32, i32) {
    %c0_i32 = arith.constant 0 : i32
    %c0_i32_0 = arith.constant 0 : i32
    %c0_i32_1 = arith.constant 0 : i32
    return %arg0, %c0_i32, %c0_i32_0 : i32, i32, i32
  }
  func.func @transform_1(%arg0: i32, %arg1: i32) -> (i32, i32, i32) {
    %c0_i32 = arith.constant 0 : i32
    %c0_i32_0 = arith.constant 0 : i32
    %c0_i32_1 = arith.constant 0 : i32
    return %arg1, %c0_i32, %c0_i32_0 : i32, i32, i32
  }
  func.func @transform_2(%arg0: i32, %arg1: i32) -> (i32, i32, i32) {
    %c0_i32 = arith.constant 0 : i32
    %c0_i32_0 = arith.constant 0 : i32
    %c0_i32_1 = arith.constant 0 : i32
    return %arg1, %c0_i32, %c0_i32_0 : i32, i32, i32
  }
  func.func @transform_3(%arg0: i32, %arg1: i32) -> (i32, i32, i32) {
    %c0_i32 = arith.constant 0 : i32
    %c0_i32_0 = arith.constant 0 : i32
    %c0_i32_1 = arith.constant 0 : i32
    return %arg1, %c0_i32, %c0_i32_0 : i32, i32, i32
  }
  func.func @transform_4(%arg0: i32, %arg1: i32) -> (i32, i32, i32) {
    %c0_i32 = arith.constant 0 : i32
    %c0_i32_0 = arith.constant 0 : i32
    %c0_i32_1 = arith.constant 0 : i32
    return %arg1, %c0_i32, %c0_i32_0 : i32, i32, i32
  }
  func.func @transform_5(%arg0: i32, %arg1: i32) -> (i32, i32, i32) {
    %c0_i32 = arith.constant 0 : i32
    %c0_i32_0 = arith.constant 0 : i32
    %c0_i32_1 = arith.constant 0 : i32
    return %arg1, %c0_i32, %c0_i32_0 : i32, i32, i32
  }
  func.func @transform_6(%arg0: i32, %arg1: i32) -> (i32, i32, i32) {
    %c0_i32 = arith.constant 0 : i32
    %c0_i32_0 = arith.constant 0 : i32
    %c0_i32_1 = arith.constant 0 : i32
    return %arg1, %c0_i32, %c0_i32_0 : i32, i32, i32
  }
  func.func @transform_7(%arg0: i32, %arg1: i32) -> (i32, i32, i32) {
    %c0_i32 = arith.constant 0 : i32
    %c0_i32_0 = arith.constant 0 : i32
    %c0_i32_1 = arith.constant 0 : i32
    return %arg1, %c0_i32, %c0_i32_0 : i32, i32, i32
  }
  func.func @transform_8(%arg0: i32, %arg1: i32) -> (i32, i32, i32) {
    %c0_i32 = arith.constant 0 : i32
    %c0_i32_0 = arith.constant 0 : i32
    %c0_i32_1 = arith.constant 0 : i32
    return %arg1, %c0_i32, %c0_i32_0 : i32, i32, i32
  }
  func.func @transform_9(%arg0: i32, %arg1: i32) -> (i32, i32, i32) {
    %c0_i32 = arith.constant 0 : i32
    %c0_i32_0 = arith.constant 0 : i32
    %c0_i32_1 = arith.constant 0 : i32
    return %arg1, %c0_i32, %c0_i32_0 : i32, i32, i32
  }
  func.func @transform_10(%arg0: i32, %arg1: i32) -> (i32, i32, i32) {
    %c0_i32 = arith.constant 0 : i32
    %c0_i32_0 = arith.constant 0 : i32
    %c0_i32_1 = arith.constant 0 : i32
    return %arg1, %c0_i32, %c0_i32_0 : i32, i32, i32
  }
  func.func @transform_11(%arg0: i32, %arg1: i32) -> (i32, i32, i32) {
    %c0_i32 = arith.constant 0 : i32
    %c0_i32_0 = arith.constant 0 : i32
    %c0_i32_1 = arith.constant 0 : i32
    return %arg1, %c0_i32, %c0_i32_0 : i32, i32, i32
  }
  func.func @transform_12(%arg0: i32, %arg1: i32) -> (i32, i32, i32) {
    %c0_i32 = arith.constant 0 : i32
    %c0_i32_0 = arith.constant 0 : i32
    %c0_i32_1 = arith.constant 0 : i32
    return %arg1, %c0_i32, %c0_i32_0 : i32, i32, i32
  }
  func.func @transform_13(%arg0: i32, %arg1: i32) -> (i32, i32) {
    %c0_i32 = arith.constant 0 : i32
    %c0_i32_0 = arith.constant 0 : i32
    %c0_i32_1 = arith.constant 0 : i32
    return %c0_i32, %c0_i32_0 : i32, i32
  }
  func.func @transform_14(%arg0: i32, %arg1: i32) -> (i32, i32) {
    %c0_i32 = arith.constant 0 : i32
    %c0_i32_0 = arith.constant 0 : i32
    %c0_i32_1 = arith.constant 0 : i32
    return %c0_i32, %c0_i32_0 : i32, i32
  }
  func.func @transform_15(%arg0: i32, %arg1: i32) -> (i32, i32, i32) {
    %c0_i32 = arith.constant 0 : i32
    %c0_i32_0 = arith.constant 0 : i32
    %c0_i32_1 = arith.constant 0 : i32
    return %arg0, %c0_i32, %c0_i32_0 : i32, i32, i32
  }
}

</mosaic_0001>

<llo_original>
// kernel: tpu_custom_call.1
$region0: #{tpu_custom_call.1}
  #allocation0 [shape = 'u32[]', space=smem, size = 0x4, offset = 0x4, fixed_abs, tag = 'smem constant byte address 0x4 - core index']
  #allocation1 [shape = 'u32[72,128]{1,0:T(1,128)}', space=vmem, size = 0x9000, scoped, tag = 'internal scratch']
  #allocation2 [shape = 'f32[2,8,64]{2,1,0:T(8,128)}', space=vmem, size = 0x2000, scoped, tag = 'scratch operand']
  #allocation3 [shape = 'f32[16,64]{1,0:T(8,128)}', space=vmem, size = 0x2000, scoped, tag = 'scratch operand']
  %s0 = inlined_call_operand.vmem [shape: f32[2,8,64], index: 0, kind: input, shape index: {}]
  %s1 = inlined_call_operand.vmem [shape: f32[2,1,64], index: 1, kind: input, shape index: {}]
  %s2 = inlined_call_operand.vmem [shape: f32[2,1,64], index: 2, kind: input, shape index: {}]
  %s3 = inlined_call_operand.vmem [shape: bf16[2,64,192], index: 3, kind: input, shape index: {}]
  %s4 = inlined_call_operand.vmem [shape: f32[2,1,192], index: 4, kind: input, shape index: {}]
  %s5 = inlined_call_operand.vmem [shape: bf16[2,64,64], index: 5, kind: input, shape index: {}]
  %s6 = inlined_call_operand.vmem [shape: f32[2,1,64], index: 6, kind: input, shape index: {}]
  %s7 = inlined_call_operand.vmem [shape: f32[2,1,64], index: 7, kind: input, shape index: {}]
  %s8 = inlined_call_operand.vmem [shape: f32[2,1,64], index: 8, kind: input, shape index: {}]
  %s9 = inlined_call_operand.vmem [shape: bf16[2,64,256], index: 9, kind: input, shape index: {}]
  %s10 = inlined_call_operand.vmem [shape: f32[2,1,256], index: 10, kind: input, shape index: {}]
  %s11 = inlined_call_operand.vmem [shape: bf16[2,256,64], index: 11, kind: input, shape index: {}]
  %s12 = inlined_call_operand.vmem [shape: f32[2,1,64], index: 12, kind: input, shape index: {}]
  %s13 = inlined_call_operand.vmem [shape: f32[1,64], index: 13, kind: input, shape index: {}]
  %s14 = inlined_call_operand.vmem [shape: f32[1,64], index: 14, kind: input, shape index: {}]
  %s15 = inlined_call_operand.hbm [shape: f32[2,8,64], index: 15, kind: output, shape index: {}]
  %s16 = sld [smem:[#allocation0]]
  $region101: #{tpu_custom_call.1} parent=0
    _
  %s18 = ssub.s32 1, %s16
  %s19 = scalar_select 0, %s18, %s16
  $region1: #{tpu_custom_call.1} parent=0
    #allocation4 [shape = 'u8[8192]{0}', space=vmem, size = 0x2000, scoped, tag = 'output window, operand 0, single buffered']
    #allocation5 [shape = 's32[2]{0}', space=sflag, size = 0x8, scoped, tag = 'scoped memory for tpu_custom_call.1']
    %20 = vsyncpa [#allocation5], 0
    loop: start=0, step=1, limit=4
    $region2: #{tpu_custom_call.1} parent=1 // loop_pre_header
      _
    $region3: #{tpu_custom_call.1} parent=1 // loop_header
      %s22 = sphi 0, %s26
      %p23 = scmp.ge.s32.totalorder %s22, 4
      %s29 = sphi 0, %s41
      %s30 = sphi 0, %s37
      %s31 = sphi 0, %s29
      %s32 = sphi 0, %s30
      %s33 = sphi 0, %s31
      %s34 = sphi 0, %s32
      %s44 = sphi 0, %s46
      %s47 = sphi 0, %s44
      %s48 = sphi 0, %s47
      %s64 = sphi 0, %s48
      %s70 = sphi 0, %s72
      %s73 = sphi 0, %s70
      %s74 = sphi 0, %s73
      %s90 = sphi 0, %s74
      %s96 = sphi 0, %s98
      %s99 = sphi 0, %s96
      %s100 = sphi 0, %s99
      %s116 = sphi 0, %s100
      %s122 = sphi 0, %s124
      %s125 = sphi 0, %s122
      %s126 = sphi 0, %s125
      %s142 = sphi 0, %s126
      %s148 = sphi 0, %s150
      %s151 = sphi 0, %s148
      %s152 = sphi 0, %s151
      %s168 = sphi 0, %s152
      %s174 = sphi 0, %s176
      %s177 = sphi 0, %s174
      %s178 = sphi 0, %s177
      %s194 = sphi 0, %s178
      %s200 = sphi 0, %s202
      %s203 = sphi 0, %s200
      %s204 = sphi 0, %s203
      %s220 = sphi 0, %s204
      %s226 = sphi 0, %s228
      %s229 = sphi 0, %s226
      %s230 = sphi 0, %s229
      %s246 = sphi 0, %s230
      %s252 = sphi 0, %s254
      %s255 = sphi 0, %s252
      %s256 = sphi 0, %s255
      %s272 = sphi 0, %s256
      %s278 = sphi 0, %s280
      %s281 = sphi 0, %s278
      %s282 = sphi 0, %s281
      %s298 = sphi 0, %s282
      %s304 = sphi 0, %s306
      %s307 = sphi 0, %s304
      %s308 = sphi 0, %s307
      %s324 = sphi 0, %s308
      %s330 = sphi 0, %s332
      %s333 = sphi 0, %s330
      %s334 = sphi 0, %s333
      %s350 = sphi 0, %s334
      %s356 = sphi 0, %s358
      %s359 = sphi 0, %s356
      %s360 = sphi 0, %s359
      %s376 = sphi 0, %s360
      %s380 = sphi 0, %s380
      %s382 = sphi 0, %s380
      %s383 = sphi 0, %s382
      %s397 = sphi 0, %s383
      %s401 = sphi 0, %s401
      %s403 = sphi 0, %s401
      %s404 = sphi 0, %s403
      %s418 = sphi 0, %s404
      %s424 = sphi 0, %s426
      %s427 = sphi 0, %s424
      %s428 = sphi 0, %s427
      %s444 = sphi 0, %s428
    $region4: #{tpu_custom_call.1} parent=1 // loop_header_branch
      %25 = sbr.rel (%p23) target = $region8
    $region5: #{tpu_custom_call.1} parent=1 // loop_body
      %s27 = ssub.s32 %s22, 1
      %s28 = ssub.s32 %s22, 2
      %s35 = sadd.s32 1, %s30
      %p36 = scmp.ge.s32.totalorder %s35, 2
      %s37 = scalar_select %p36, 0, %s35
      %s38 = sadd.s32 1, %s29
      %s39 = scalar_select %p36, %s38, %s29
      %p40 = scmp.ge.s32.totalorder %s39, 1
      %s41 = scalar_select %p40, 0, %s39
      %s42 = ssub.s32 %s29, %s41
      %p43 = scmp.eq.s32.totalorder %s42, 0
      %s45 = sadd.s32 %s44, 1
      %s46 = scalar_select %p43, %s44, %s45
      %p49 = pneg %p43
      %p50 = scmp.eq.s32.totalorder %s22, 1
      %p51 = por %p49, %p50
      %p52 = scmp.ne.s32.totalorder %s44, %s47
      %p53 = scmp.eq.s32.totalorder %s22, 0
      %p54 = por %p52, %p53
      %p55 = scmp.ne.s32.totalorder %s44, %s47
      %p56 = scmp.eq.s32.totalorder %s27, 1
      %p57 = por %p55, %p56
      %p58 = scmp.ne.s32.totalorder %s47, %s48
      %p59 = scmp.eq.s32.totalorder %s27, 0
      %p60 = por %p58, %p59
      %p61 = scmp.ne.s32.totalorder %s47, %s48
      %p62 = scmp.eq.s32.totalorder %s28, 1
      %p63 = por %p61, %p62
      %p65 = scmp.ne.s32.totalorder %s48, %s64
      %p66 = scmp.eq.s32.totalorder %s28, 0
      %p67 = por %p65, %p66
      %s68 = ssub.s32 %s30, %s37
      %p69 = scmp.eq.s32.totalorder %s68, 0
      %s71 = sadd.s32 %s70, 1
      %s72 = scalar_select %p69, %s70, %s71
      %p75 = pneg %p69
      %p76 = scmp.eq.s32.totalorder %s22, 1
      %p77 = por %p75, %p76
      %p78 = scmp.ne.s32.totalorder %s70, %s73
      %p79 = scmp.eq.s32.totalorder %s22, 0
      %p80 = por %p78, %p79
      %p81 = scmp.ne.s32.totalorder %s70, %s73
      %p82 = scmp.eq.s32.totalorder %s27, 1
      %p83 = por %p81, %p82
      %p84 = scmp.ne.s32.totalorder %s73, %s74
      %p85 = scmp.eq.s32.totalorder %s27, 0
      %p86 = por %p84, %p85
      %p87 = scmp.ne.s32.totalorder %s73, %s74
      %p88 = scmp.eq.s32.totalorder %s28, 1
      %p89 = por %p87, %p88
      %p91 = scmp.ne.s32.totalorder %s74, %s90
      %p92 = scmp.eq.s32.totalorder %s28, 0
      %p93 = por %p91, %p92
      %s94 = ssub.s32 %s30, %s37
      %p95 = scmp.eq.s32.totalorder %s94, 0
      %s97 = sadd.s32 %s96, 1
      %s98 = scalar_select %p95, %s96, %s97
      %p101 = pneg %p95
      %p102 = scmp.eq.s32.totalorder %s22, 1
      %p103 = por %p101, %p102
      %p104 = scmp.ne.s32.totalorder %s96, %s99
      %p105 = scmp.eq.s32.totalorder %s22, 0
      %p106 = por %p104, %p105
      %p107 = scmp.ne.s32.totalorder %s96, %s99
      %p108 = scmp.eq.s32.totalorder %s27, 1
      %p109 = por %p107, %p108
      %p110 = scmp.ne.s32.totalorder %s99, %s100
      %p111 = scmp.eq.s32.totalorder %s27, 0
      %p112 = por %p110, %p111
      %p113 = scmp.ne.s32.totalorder %s99, %s100
      %p114 = scmp.eq.s32.totalorder %s28, 1
      %p115 = por %p113, %p114
      %p117 = scmp.ne.s32.totalorder %s100, %s116
      %p118 = scmp.eq.s32.totalorder %s28, 0
      %p119 = por %p117, %p118
      %s120 = ssub.s32 %s30, %s37
      %p121 = scmp.eq.s32.totalorder %s120, 0
      %s123 = sadd.s32 %s122, 1
      %s124 = scalar_select %p121, %s122, %s123
      %p127 = pneg %p121
      %p128 = scmp.eq.s32.totalorder %s22, 1
      %p129 = por %p127, %p128
      %p130 = scmp.ne.s32.totalorder %s122, %s125
      %p131 = scmp.eq.s32.totalorder %s22, 0
      %p132 = por %p130, %p131
      %p133 = scmp.ne.s32.totalorder %s122, %s125
      %p134 = scmp.eq.s32.totalorder %s27, 1
      %p135 = por %p133, %p134
      %p136 = scmp.ne.s32.totalorder %s125, %s126
      %p137 = scmp.eq.s32.totalorder %s27, 0
      %p138 = por %p136, %p137
      %p139 = scmp.ne.s32.totalorder %s125, %s126
      %p140 = scmp.eq.s32.totalorder %s28, 1
      %p141 = por %p139, %p140
      %p143 = scmp.ne.s32.totalorder %s126, %s142
      %p144 = scmp.eq.s32.totalorder %s28, 0
      %p145 = por %p143, %p144
      %s146 = ssub.s32 %s30, %s37
      %p147 = scmp.eq.s32.totalorder %s146, 0
      %s149 = sadd.s32 %s148, 1
      %s150 = scalar_select %p147, %s148, %s149
      %p153 = pneg %p147
      %p154 = scmp.eq.s32.totalorder %s22, 1
      %p155 = por %p153, %p154
      %p156 = scmp.ne.s32.totalorder %s148, %s151
      %p157 = scmp.eq.s32.totalorder %s22, 0
      %p158 = por %p156, %p157
      %p159 = scmp.ne.s32.totalorder %s148, %s151
      %p160 = scmp.eq.s32.totalorder %s27, 1
      %p161 = por %p159, %p160
      %p162 = scmp.ne.s32.totalorder %s151, %s152
      %p163 = scmp.eq.s32.totalorder %s27, 0
      %p164 = por %p162, %p163
      %p165 = scmp.ne.s32.totalorder %s151, %s152
      %p166 = scmp.eq.s32.totalorder %s28, 1
      %p167 = por %p165, %p166
      %p169 = scmp.ne.s32.totalorder %s152, %s168
      %p170 = scmp.eq.s32.totalorder %s28, 0
      %p171 = por %p169, %p170
      %s172 = ssub.s32 %s30, %s37
      %p173 = scmp.eq.s32.totalorder %s172, 0
      %s175 = sadd.s32 %s174, 1
      %s176 = scalar_select %p173, %s174, %s175
      %p179 = pneg %p173
      %p180 = scmp.eq.s32.totalorder %s22, 1
      %p181 = por %p179, %p180
      %p182 = scmp.ne.s32.totalorder %s174, %s177
      %p183 = scmp.eq.s32.totalorder %s22, 0
      %p184 = por %p182, %p183
      %p185 = scmp.ne.s32.totalorder %s174, %s177
      %p186 = scmp.eq.s32.totalorder %s27, 1
      %p187 = por %p185, %p186
      %p188 = scmp.ne.s32.totalorder %s177, %s178
      %p189 = scmp.eq.s32.totalorder %s27, 0
      %p190 = por %p188, %p189
      %p191 = scmp.ne.s32.totalorder %s177, %s178
      %p192 = scmp.eq.s32.totalorder %s28, 1
      %p193 = por %p191, %p192
      %p195 = scmp.ne.s32.totalorder %s178, %s194
      %p196 = scmp.eq.s32.totalorder %s28, 0
      %p197 = por %p195, %p196
      %s198 = ssub.s32 %s30, %s37
      %p199 = scmp.eq.s32.totalorder %s198, 0
      %s201 = sadd.s32 %s200, 1
      %s202 = scalar_select %p199, %s200, %s201
      %p205 = pneg %p199
      %p206 = scmp.eq.s32.totalorder %s22, 1
      %p207 = por %p205, %p206
      %p208 = scmp.ne.s32.totalorder %s200, %s203
      %p209 = scmp.eq.s32.totalorder %s22, 0
      %p210 = por %p208, %p209
      %p211 = scmp.ne.s32.totalorder %s200, %s203
      %p212 = scmp.eq.s32.totalorder %s27, 1
      %p213 = por %p211, %p212
      %p214 = scmp.ne.s32.totalorder %s203, %s204
      %p215 = scmp.eq.s32.totalorder %s27, 0
      %p216 = por %p214, %p215
      %p217 = scmp.ne.s32.totalorder %s203, %s204
      %p218 = scmp.eq.s32.totalorder %s28, 1
      %p219 = por %p217, %p218
      %p221 = scmp.ne.s32.totalorder %s204, %s220
      %p222 = scmp.eq.s32.totalorder %s28, 0
      %p223 = por %p221, %p222
      %s224 = ssub.s32 %s30, %s37
      %p225 = scmp.eq.s32.totalorder %s224, 0
      %s227 = sadd.s32 %s226, 1
      %s228 = scalar_select %p225, %s226, %s227
      %p231 = pneg %p225
      %p232 = scmp.eq.s32.totalorder %s22, 1
      %p233 = por %p231, %p232
      %p234 = scmp.ne.s32.totalorder %s226, %s229
      %p235 = scmp.eq.s32.totalorder %s22, 0
      %p236 = por %p234, %p235
      %p237 = scmp.ne.s32.totalorder %s226, %s229
      %p238 = scmp.eq.s32.totalorder %s27, 1
      %p239 = por %p237, %p238
      %p240 = scmp.ne.s32.totalorder %s229, %s230
      %p241 = scmp.eq.s32.totalorder %s27, 0
      %p242 = por %p240, %p241
      %p243 = scmp.ne.s32.totalorder %s229, %s230
      %p244 = scmp.eq.s32.totalorder %s28, 1
      %p245 = por %p243, %p244
      %p247 = scmp.ne.s32.totalorder %s230, %s246
      %p248 = scmp.eq.s32.totalorder %s28, 0
      %p249 = por %p247, %p248
      %s250 = ssub.s32 %s30, %s37
      %p251 = scmp.eq.s32.totalorder %s250, 0
      %s253 = sadd.s32 %s252, 1
      %s254 = scalar_select %p251, %s252, %s253
      %p257 = pneg %p251
      %p258 = scmp.eq.s32.totalorder %s22, 1
      %p259 = por %p257, %p258
      %p260 = scmp.ne.s32.totalorder %s252, %s255
      %p261 = scmp.eq.s32.totalorder %s22, 0
      %p262 = por %p260, %p261
      %p263 = scmp.ne.s32.totalorder %s252, %s255
      %p264 = scmp.eq.s32.totalorder %s27, 1
      %p265 = por %p263, %p264
      %p266 = scmp.ne.s32.totalorder %s255, %s256
      %p267 = scmp.eq.s32.totalorder %s27, 0
      %p268 = por %p266, %p267
      %p269 = scmp.ne.s32.totalorder %s255, %s256
      %p270 = scmp.eq.s32.totalorder %s28, 1
      %p271 = por %p269, %p270
      %p273 = scmp.ne.s32.totalorder %s256, %s272
      %p274 = scmp.eq.s32.totalorder %s28, 0
      %p275 = por %p273, %p274
      %s276 = ssub.s32 %s30, %s37
      %p277 = scmp.eq.s32.totalorder %s276, 0
      %s279 = sadd.s32 %s278, 1
      %s280 = scalar_select %p277, %s278, %s279
      %p283 = pneg %p277
      %p284 = scmp.eq.s32.totalorder %s22, 1
      %p285 = por %p283, %p284
      %p286 = scmp.ne.s32.totalorder %s278, %s281
      %p287 = scmp.eq.s32.totalorder %s22, 0
      %p288 = por %p286, %p287
      %p289 = scmp.ne.s32.totalorder %s278, %s281
      %p290 = scmp.eq.s32.totalorder %s27, 1
      %p291 = por %p289, %p290
      %p292 = scmp.ne.s32.totalorder %s281, %s282
      %p293 = scmp.eq.s32.totalorder %s27, 0
      %p294 = por %p292, %p293
      %p295 = scmp.ne.s32.totalorder %s281, %s282
      %p296 = scmp.eq.s32.totalorder %s28, 1
      %p297 = por %p295, %p296
      %p299 = scmp.ne.s32.totalorder %s282, %s298
      %p300 = scmp.eq.s32.totalorder %s28, 0
      %p301 = por %p299, %p300
      %s302 = ssub.s32 %s30, %s37
      %p303 = scmp.eq.s32.totalorder %s302, 0
      %s305 = sadd.s32 %s304, 1
      %s306 = scalar_select %p303, %s304, %s305
      %p309 = pneg %p303
      %p310 = scmp.eq.s32.totalorder %s22, 1
      %p311 = por %p309, %p310
      %p312 = scmp.ne.s32.totalorder %s304, %s307
      %p313 = scmp.eq.s32.totalorder %s22, 0
      %p314 = por %p312, %p313
      %p315 = scmp.ne.s32.totalorder %s304, %s307
      %p316 = scmp.eq.s32.totalorder %s27, 1
      %p317 = por %p315, %p316
      %p318 = scmp.ne.s32.totalorder %s307, %s308
      %p319 = scmp.eq.s32.totalorder %s27, 0
      %p320 = por %p318, %p319
      %p321 = scmp.ne.s32.totalorder %s307, %s308
      %p322 = scmp.eq.s32.totalorder %s28, 1
      %p323 = por %p321, %p322
      %p325 = scmp.ne.s32.totalorder %s308, %s324
      %p326 = scmp.eq.s32.totalorder %s28, 0
      %p327 = por %p325, %p326
      %s328 = ssub.s32 %s30, %s37
      %p329 = scmp.eq.s32.totalorder %s328, 0
      %s331 = sadd.s32 %s330, 1
      %s332 = scalar_select %p329, %s330, %s331
      %p335 = pneg %p329
      %p336 = scmp.eq.s32.totalorder %s22, 1
      %p337 = por %p335, %p336
      %p338 = scmp.ne.s32.totalorder %s330, %s333
      %p339 = scmp.eq.s32.totalorder %s22, 0
      %p340 = por %p338, %p339
      %p341 = scmp.ne.s32.totalorder %s330, %s333
      %p342 = scmp.eq.s32.totalorder %s27, 1
      %p343 = por %p341, %p342
      %p344 = scmp.ne.s32.totalorder %s333, %s334
      %p345 = scmp.eq.s32.totalorder %s27, 0
      %p346 = por %p344, %p345
      %p347 = scmp.ne.s32.totalorder %s333, %s334
      %p348 = scmp.eq.s32.totalorder %s28, 1
      %p349 = por %p347, %p348
      %p351 = scmp.ne.s32.totalorder %s334, %s350
      %p352 = scmp.eq.s32.totalorder %s28, 0
      %p353 = por %p351, %p352
      %s354 = ssub.s32 %s30, %s37
      %p355 = scmp.eq.s32.totalorder %s354, 0
      %s357 = sadd.s32 %s356, 1
      %s358 = scalar_select %p355, %s356, %s357
      %p361 = pneg %p355
      %p362 = scmp.eq.s32.totalorder %s22, 1
      %p363 = por %p361, %p362
      %p364 = scmp.ne.s32.totalorder %s356, %s359
      %p365 = scmp.eq.s32.totalorder %s22, 0
      %p366 = por %p364, %p365
      %p367 = scmp.ne.s32.totalorder %s356, %s359
      %p368 = scmp.eq.s32.totalorder %s27, 1
      %p369 = por %p367, %p368
      %p370 = scmp.ne.s32.totalorder %s359, %s360
      %p371 = scmp.eq.s32.totalorder %s27, 0
      %p372 = por %p370, %p371
      %p373 = scmp.ne.s32.totalorder %s359, %s360
      %p374 = scmp.eq.s32.totalorder %s28, 1
      %p375 = por %p373, %p374
      %p377 = scmp.ne.s32.totalorder %s360, %s376
      %p378 = scmp.eq.s32.totalorder %s28, 0
      %p379 = por %p377, %p378
      %s381 = sadd.s32 %s380, 1
      %p384 = scmp.eq.s32.totalorder %s22, 1
      %p385 = scmp.ne.s32.totalorder %s380, %s382
      %p386 = scmp.eq.s32.totalorder %s22, 0
      %p387 = por %p385, %p386
      %p388 = scmp.ne.s32.totalorder %s380, %s382
      %p389 = scmp.eq.s32.totalorder %s27, 1
      %p390 = por %p388, %p389
      %p391 = scmp.ne.s32.totalorder %s382, %s383
      %p392 = scmp.eq.s32.totalorder %s27, 0
      %p393 = por %p391, %p392
      %p394 = scmp.ne.s32.totalorder %s382, %s383
      %p395 = scmp.eq.s32.totalorder %s28, 1
      %p396 = por %p394, %p395
      %p398 = scmp.ne.s32.totalorder %s383, %s397
      %p399 = scmp.eq.s32.totalorder %s28, 0
      %p400 = por %p398, %p399
      %s402 = sadd.s32 %s401, 1
      %p405 = scmp.eq.s32.totalorder %s22, 1
      %p406 = scmp.ne.s32.totalorder %s401, %s403
      %p407 = scmp.eq.s32.totalorder %s22, 0
      %p408 = por %p406, %p407
      %p409 = scmp.ne.s32.totalorder %s401, %s403
      %p410 = scmp.eq.s32.totalorder %s27, 1
      %p411 = por %p409, %p410
      %p412 = scmp.ne.s32.totalorder %s403, %s404
      %p413 = scmp.eq.s32.totalorder %s27, 0
      %p414 = por %p412, %p413
      %p415 = scmp.ne.s32.totalorder %s403, %s404
      %p416 = scmp.eq.s32.totalorder %s28, 1
      %p417 = por %p415, %p416
      %p419 = scmp.ne.s32.totalorder %s404, %s418
      %p420 = scmp.eq.s32.totalorder %s28, 0
      %p421 = por %p419, %p420
      %s422 = ssub.s32 %s29, %s41
      %p423 = scmp.eq.s32.totalorder %s422, 0
      %s425 = sadd.s32 %s424, 1
      %s426 = scalar_select %p423, %s424, %s425
      %p429 = pneg %p423
      %p430 = scmp.eq.s32.totalorder %s22, 1
      %p431 = por %p429, %p430
      %p432 = scmp.ne.s32.totalorder %s424, %s427
      %p433 = scmp.eq.s32.totalorder %s22, 0
      %p434 = por %p432, %p433
      %p435 = scmp.ne.s32.totalorder %s424, %s427
      %p436 = scmp.eq.s32.totalorder %s27, 1
      %p437 = por %p435, %p436
      %p438 = scmp.ne.s32.totalorder %s427, %s428
      %p439 = scmp.eq.s32.totalorder %s27, 0
      %p440 = por %p438, %p439
      %p441 = scmp.ne.s32.totalorder %s427, %s428
      %p442 = scmp.eq.s32.totalorder %s28, 1
      %p443 = por %p441, %p442
      %p445 = scmp.ne.s32.totalorder %s428, %s444
      %p446 = scmp.eq.s32.totalorder %s28, 0
      %p447 = por %p445, %p446
      %p448 = scmp.le.s32.totalorder 1, %s22
      %p449 = scmp.lt.s32.totalorder %s22, 3
      %p450 = pnand %p448, %p449
      %p451 = pneg %p450
      // Predicated region
      $region9: #{tpu_custom_call.1} parent=5 // pred_check
        _
      $region10: #{tpu_custom_call.1} parent=5 // pred_check_branch
        %453 = sbr.rel (%p450) target = $region12
      $region11: #{tpu_custom_call.1} parent=5 // pred_region
        %s454 = ssub.s32 %s22, 1
        // Predicated region
        $region13: #{tpu_custom_call.1} parent=11 // pred_check
          %p455 = pneg %p60
        $region14: #{tpu_custom_call.1} parent=11 // pred_check_branch
          %457 = sbr.rel (%p455) target = $region16
        $region15: #{tpu_custom_call.1} parent=11 // pred_region
          %s458 = smul.u32 2, %s31
          %p459 = scmp.lt.s32.totalorder %s458, 1
          %s460 = scalar_select %p459, %s458, 1
          %s461 = smul.addr %s460, 8
          %s462 = scalar_lea.vmem %s0, %s461
          %s463 = smul.u32 2, %s31
        $region16: #{tpu_custom_call.1} parent=11 // pred_fallthru
          _
        // Predicated region
        $region17: #{tpu_custom_call.1} parent=11 // pred_check
          %p464 = pneg %p393
        $region18: #{tpu_custom_call.1} parent=11 // pred_check_branch
          %466 = sbr.rel (%p464) target = $region20
        $region19: #{tpu_custom_call.1} parent=11 // pred_region
          _
        $region20: #{tpu_custom_call.1} parent=11 // pred_fallthru
          _
        // Predicated region
        $region21: #{tpu_custom_call.1} parent=11 // pred_check
          %p467 = pneg %p414
        $region22: #{tpu_custom_call.1} parent=11 // pred_check_branch
          %469 = sbr.rel (%p467) target = $region24
        $region23: #{tpu_custom_call.1} parent=11 // pred_region
          _
        $region24: #{tpu_custom_call.1} parent=11 // pred_fallthru
          _
      $region12: #{tpu_custom_call.1} parent=5 // pred_fallthru
        _
      %p470 = scmp.lt.s32.totalorder %s22, 2
      // Predicated region
      $region25: #{tpu_custom_call.1} parent=5 // pred_check
        %p471 = pneg %p470
      $region26: #{tpu_custom_call.1} parent=5 // pred_check_branch
        %473 = sbr.rel (%p471) target = $region28
      $region27: #{tpu_custom_call.1} parent=5 // pred_region
        // Predicated region
        $region29: #{tpu_custom_call.1} parent=27 // pred_check
          %p474 = pneg %p80
        $region30: #{tpu_custom_call.1} parent=27 // pred_check_branch
          %476 = sbr.rel (%p474) target = $region32
        $region31: #{tpu_custom_call.1} parent=27 // pred_region
          %p477 = scmp.lt.s32.totalorder %s30, 1
          %s478 = scalar_select %p477, %s30, 1
          %s479 = scalar_lea.vmem %s1, %s478
        $region32: #{tpu_custom_call.1} parent=27 // pred_fallthru
          _
        // Predicated region
        $region33: #{tpu_custom_call.1} parent=27 // pred_check
          %p480 = pneg %p106
        $region34: #{tpu_custom_call.1} parent=27 // pred_check_branch
          %482 = sbr.rel (%p480) target = $region36
        $region35: #{tpu_custom_call.1} parent=27 // pred_region
          %p483 = scmp.lt.s32.totalorder %s30, 1
          %s484 = scalar_select %p483, %s30, 1
          %s485 = scalar_lea.vmem %s2, %s484
        $region36: #{tpu_custom_call.1} parent=27 // pred_fallthru
          _
        // Predicated region
        $region37: #{tpu_custom_call.1} parent=27 // pred_check
          %p486 = pneg %p132
        $region38: #{tpu_custom_call.1} parent=27 // pred_check_branch
          %488 = sbr.rel (%p486) target = $region40
        $region39: #{tpu_custom_call.1} parent=27 // pred_region
          %p489 = scmp.lt.s32.totalorder %s30, 1
          %s490 = scalar_select %p489, %s30, 1
          %s491 = smul.addr %s490, 16
          %s492 = smul.addr %s491, 4
          %s493 = scalar_lea.vmem %s3, %s492
        $region40: #{tpu_custom_call.1} parent=27 // pred_fallthru
          _
        // Predicated region
        $region41: #{tpu_custom_call.1} parent=27 // pred_check
          %p494 = pneg %p158
        $region42: #{tpu_custom_call.1} parent=27 // pred_check_branch
          %496 = sbr.rel (%p494) target = $region44
        $region43: #{tpu_custom_call.1} parent=27 // pred_region
          %p497 = scmp.lt.s32.totalorder %s30, 1
          %s498 = scalar_select %p497, %s30, 1
          %s499 = smul.addr %s498, 2
          %s500 = scalar_lea.vmem %s4, %s499
        $region44: #{tpu_custom_call.1} parent=27 // pred_fallthru
          _
        // Predicated region
        $region45: #{tpu_custom_call.1} parent=27 // pred_check
          %p501 = pneg %p184
        $region46: #{tpu_custom_call.1} parent=27 // pred_check_branch
          %503 = sbr.rel (%p501) target = $region48
        $region47: #{tpu_custom_call.1} parent=27 // pred_region
          %p504 = scmp.lt.s32.totalorder %s30, 1
          %s505 = scalar_select %p504, %s30, 1
          %s506 = smul.addr %s505, 8
          %s507 = smul.addr %s506, 4
          %s508 = scalar_lea.vmem %s5, %s507
        $region48: #{tpu_custom_call.1} parent=27 // pred_fallthru
          _
        // Predicated region
        $region49: #{tpu_custom_call.1} parent=27 // pred_check
          %p509 = pneg %p210
        $region50: #{tpu_custom_call.1} parent=27 // pred_check_branch
          %511 = sbr.rel (%p509) target = $region52
        $region51: #{tpu_custom_call.1} parent=27 // pred_region
          %p512 = scmp.lt.s32.totalorder %s30, 1
          %s513 = scalar_select %p512, %s30, 1
          %s514 = scalar_lea.vmem %s6, %s513
        $region52: #{tpu_custom_call.1} parent=27 // pred_fallthru
          _
        // Predicated region
        $region53: #{tpu_custom_call.1} parent=27 // pred_check
          %p515 = pneg %p236
        $region54: #{tpu_custom_call.1} parent=27 // pred_check_branch
          %517 = sbr.rel (%p515) target = $region56
        $region55: #{tpu_custom_call.1} parent=27 // pred_region
          %p518 = scmp.lt.s32.totalorder %s30, 1
          %s519 = scalar_select %p518, %s30, 1
          %s520 = scalar_lea.vmem %s7, %s519
        $region56: #{tpu_custom_call.1} parent=27 // pred_fallthru
          _
        // Predicated region
        $region57: #{tpu_custom_call.1} parent=27 // pred_check
          %p521 = pneg %p262
        $region58: #{tpu_custom_call.1} parent=27 // pred_check_branch
          %523 = sbr.rel (%p521) target = $region60
        $region59: #{tpu_custom_call.1} parent=27 // pred_region
          %p524 = scmp.lt.s32.totalorder %s30, 1
          %s525 = scalar_select %p524, %s30, 1
          %s526 = scalar_lea.vmem %s8, %s525
        $region60: #{tpu_custom_call.1} parent=27 // pred_fallthru
          _
        // Predicated region
        $region61: #{tpu_custom_call.1} parent=27 // pred_check
          %p527 = pneg %p288
        $region62: #{tpu_custom_call.1} parent=27 // pred_check_branch
          %529 = sbr.rel (%p527) target = $region64
        $region63: #{tpu_custom_call.1} parent=27 // pred_region
          %p530 = scmp.lt.s32.totalorder %s30, 1
          %s531 = scalar_select %p530, %s30, 1
          %s532 = smul.addr %s531, 16
          %s533 = smul.addr %s532, 4
          %s534 = scalar_lea.vmem %s9, %s533
        $region64: #{tpu_custom_call.1} parent=27 // pred_fallthru
          _
        // Predicated region
        $region65: #{tpu_custom_call.1} parent=27 // pred_check
          %p535 = pneg %p314
        $region66: #{tpu_custom_call.1} parent=27 // pred_check_branch
          %537 = sbr.rel (%p535) target = $region68
        $region67: #{tpu_custom_call.1} parent=27 // pred_region
          %p538 = scmp.lt.s32.totalorder %s30, 1
          %s539 = scalar_select %p538, %s30, 1
          %s540 = smul.addr %s539, 2
          %s541 = scalar_lea.vmem %s10, %s540
        $region68: #{tpu_custom_call.1} parent=27 // pred_fallthru
          _
        // Predicated region
        $region69: #{tpu_custom_call.1} parent=27 // pred_check
          %p542 = pneg %p340
        $region70: #{tpu_custom_call.1} parent=27 // pred_check_branch
          %544 = sbr.rel (%p542) target = $region72
        $region71: #{tpu_custom_call.1} parent=27 // pred_region
          %p545 = scmp.lt.s32.totalorder %s30, 1
          %s546 = scalar_select %p545, %s30, 1
          %s547 = smul.addr %s546, 32
          %s548 = smul.addr %s547, 4
          %s549 = scalar_lea.vmem %s11, %s548
        $region72: #{tpu_custom_call.1} parent=27 // pred_fallthru
          _
        // Predicated region
        $region73: #{tpu_custom_call.1} parent=27 // pred_check
          %p550 = pneg %p366
        $region74: #{tpu_custom_call.1} parent=27 // pred_check_branch
          %552 = sbr.rel (%p550) target = $region76
        $region75: #{tpu_custom_call.1} parent=27 // pred_region
          %p553 = scmp.lt.s32.totalorder %s30, 1
          %s554 = scalar_select %p553, %s30, 1
          %s555 = scalar_lea.vmem %s12, %s554
        $region76: #{tpu_custom_call.1} parent=27 // pred_fallthru
          _
      $region28: #{tpu_custom_call.1} parent=5 // pred_fallthru
        _
      %p556 = scmp.le.s32.totalorder 1, %s22
      %p557 = scmp.lt.s32.totalorder %s22, 3
      %p558 = pnand %p556, %p557
      %p559 = pneg %p558
      // Predicated region
      $region77: #{tpu_custom_call.1} parent=5 // pred_check
        _
      $region78: #{tpu_custom_call.1} parent=5 // pred_check_branch
        %561 = sbr.rel (%p558) target = $region80
      $region79: #{tpu_custom_call.1} parent=5 // pred_region
        %s562 = ssub.s32 %s22, 1
        %s563 = smul.u32 2, %s31
        %p564 = scmp.lt.s32.totalorder %s563, 1
        %s565 = scalar_select %p564, %s563, 1
        %s566 = smul.addr %s565, 8
        %s567 = scalar_lea.vmem %s0, %s566
        %p568 = pneg %p60
        %p569 = pneg %p57
        %p570 = scmp.lt.s32.totalorder %s32, 1
        %s571 = scalar_select %p570, %s32, 1
        %s572 = scalar_lea.vmem %s1, %s571
        %p573 = pneg %p86
        %p574 = pneg %p83
        %p575 = scmp.lt.s32.totalorder %s32, 1
        %s576 = scalar_select %p575, %s32, 1
        %s577 = scalar_lea.vmem %s2, %s576
        %p578 = pneg %p112
        %p579 = pneg %p109
        %p580 = scmp.lt.s32.totalorder %s32, 1
        %s581 = scalar_select %p580, %s32, 1
        %s582 = smul.addr %s581, 16
        %s583 = smul.addr %s582, 4
        %s584 = scalar_lea.vmem %s3, %s583
        %p585 = pneg %p138
        %p586 = pneg %p135
        %p587 = scmp.lt.s32.totalorder %s32, 1
        %s588 = scalar_select %p587, %s32, 1
        %s589 = smul.addr %s588, 2
        %s590 = scalar_lea.vmem %s4, %s589
        %p591 = pneg %p164
        %p592 = pneg %p161
        %p593 = scmp.lt.s32.totalorder %s32, 1
        %s594 = scalar_select %p593, %s32, 1
        %s595 = smul.addr %s594, 8
        %s596 = smul.addr %s595, 4
        %s597 = scalar_lea.vmem %s5, %s596
        %p598 = pneg %p190
        %p599 = pneg %p187
        %p600 = scmp.lt.s32.totalorder %s32, 1
        %s601 = scalar_select %p600, %s32, 1
        %s602 = scalar_lea.vmem %s6, %s601
        %p603 = pneg %p216
        %p604 = pneg %p213
        %p605 = scmp.lt.s32.totalorder %s32, 1
        %s606 = scalar_select %p605, %s32, 1
        %s607 = scalar_lea.vmem %s7, %s606
        %p608 = pneg %p242
        %p609 = pneg %p239
        %p610 = scmp.lt.s32.totalorder %s32, 1
        %s611 = scalar_select %p610, %s32, 1
        %s612 = scalar_lea.vmem %s8, %s611
        %p613 = pneg %p268
        %p614 = pneg %p265
        %p615 = scmp.lt.s32.totalorder %s32, 1
        %s616 = scalar_select %p615, %s32, 1
        %s617 = smul.addr %s616, 16
        %s618 = smul.addr %s617, 4
        %s619 = scalar_lea.vmem %s9, %s618
        %p620 = pneg %p294
        %p621 = pneg %p291
        %p622 = scmp.lt.s32.totalorder %s32, 1
        %s623 = scalar_select %p622, %s32, 1
        %s624 = smul.addr %s623, 2
        %s625 = scalar_lea.vmem %s10, %s624
        %p626 = pneg %p320
        %p627 = pneg %p317
        %p628 = scmp.lt.s32.totalorder %s32, 1
        %s629 = scalar_select %p628, %s32, 1
        %s630 = smul.addr %s629, 32
        %s631 = smul.addr %s630, 4
        %s632 = scalar_lea.vmem %s11, %s631
        %p633 = pneg %p346
        %p634 = pneg %p343
        %p635 = scmp.lt.s32.totalorder %s32, 1
        %s636 = scalar_select %p635, %s32, 1
        %s637 = scalar_lea.vmem %s12, %s636
        %p638 = pneg %p372
        %p639 = pneg %p369
        %p640 = pneg %p393
        %p641 = pneg %p390
        %p642 = pneg %p414
        %p643 = pneg %p411
        %p644 = pneg %p440
        %p645 = pneg %p437
        %s646 = smul.u32 2, %s31
        %p647 = scmp.lt.s32.totalorder %s646, 1
        %s648 = scalar_select %p647, %s646, 1
        %s649 = smul.addr %s648, 8
        %s650 = scalar_lea.vmem %s0, %s649
        %s651 = smul.u32 2, %s31
        %p652 = scmp.lt.s32.totalorder %s32, 1
        %s653 = scalar_select %p652, %s32, 1
        %s654 = scalar_lea.vmem %s1, %s653
        %p655 = scmp.lt.s32.totalorder %s32, 1
        %s656 = scalar_select %p655, %s32, 1
        %s657 = scalar_lea.vmem %s2, %s656
        %p658 = scmp.lt.s32.totalorder %s32, 1
        %s659 = scalar_select %p658, %s32, 1
        %s660 = smul.addr %s659, 16
        %s661 = smul.addr %s660, 4
        %s662 = scalar_lea.vmem %s3, %s661
        %p663 = scmp.lt.s32.totalorder %s32, 1
        %s664 = scalar_select %p663, %s32, 1
        %s665 = smul.addr %s664, 2
        %s666 = scalar_lea.vmem %s4, %s665
        %p667 = scmp.lt.s32.totalorder %s32, 1
        %s668 = scalar_select %p667, %s32, 1
        %s669 = smul.addr %s668, 8
        %s670 = smul.addr %s669, 4
        %s671 = scalar_lea.vmem %s5, %s670
        %p672 = scmp.lt.s32.totalorder %s32, 1
        %s673 = scalar_select %p672, %s32, 1
        %s674 = scalar_lea.vmem %s6, %s673
        %p675 = scmp.lt.s32.totalorder %s32, 1
        %s676 = scalar_select %p675, %s32, 1
        %s677 = scalar_lea.vmem %s7, %s676
        %p678 = scmp.lt.s32.totalorder %s32, 1
        %s679 = scalar_select %p678, %s32, 1
        %s680 = scalar_lea.vmem %s8, %s679
        %p681 = scmp.lt.s32.totalorder %s32, 1
        %s682 = scalar_select %p681, %s32, 1
        %s683 = smul.addr %s682, 16
        %s684 = smul.addr %s683, 4
        %s685 = scalar_lea.vmem %s9, %s684
        %p686 = scmp.lt.s32.totalorder %s32, 1
        %s687 = scalar_select %p686, %s32, 1
        %s688 = smul.addr %s687, 2
        %s689 = scalar_lea.vmem %s10, %s688
        %p690 = scmp.lt.s32.totalorder %s32, 1
        %s691 = scalar_select %p690, %s32, 1
        %s692 = smul.addr %s691, 32
        %s693 = smul.addr %s692, 4
        %s694 = scalar_lea.vmem %s11, %s693
        %p695 = scmp.lt.s32.totalorder %s32, 1
        %s696 = scalar_select %p695, %s32, 1
        %s697 = scalar_lea.vmem %s12, %s696
        %s698 = smul.u32 2, %s31
        %p700 = scmp.eq.s32.totalorder %s32, 0
        // Predicated region
        $region81: #{tpu_custom_call.1} parent=79 // pred_check
          %p701 = pneg %p700
        $region82: #{tpu_custom_call.1} parent=79 // pred_check_branch
          %703 = sbr.rel (%p701) target = $region84
        $region83: #{tpu_custom_call.1} parent=79 // pred_region
          %v704 = vld [vmem:[%s650] sm:$0xff]
          %v705 = vld [vmem:[%s650 + $0x8] sm:$0xff]
          %vm706 = vcmask 523264
          %707 = vst.msk [vmem:[#allocation2] sm:$0xff] %vm706, %v704
          %708 = vst.msk [vmem:[#allocation2 + $0x8] sm:$0xff] %vm706, %v705
        $region84: #{tpu_custom_call.1} parent=79 // pred_fallthru
          _
        %v709 = vld [vmem:[#allocation2] sm:$0xff]
        %v710 = vld [vmem:[#allocation2 + $0x8] sm:$0xff]
        %v711 = vld [vmem:[%s654] sm:$0x1]
        %v712 = vld [vmem:[%s657] sm:$0x1]
        %vm713 = vcmask 523264
        %v714 = vsel %vm713, %v709, 0.0
        %715 = vadd.xlane.f32.xlu0 %v714
        %v716 = vpop.xlane.xlu0 %715
        %v717 = vsel %vm713, %v710, 0.0
        %718 = vadd.xlane.f32.xlu0 %v717
        %v719 = vpop.xlane.xlu0 %718
        %v720 = vrcp.pop 64.0
        %v721 = vmul.f32 64.0, %v720
        %v722 = vsub.f32 1.0, %v721
        %v723 = vmul.f32 %v720, %v722
        %v724 = vadd.f32 %v720, %v723
        %vm725 = vweird.f32 %v720
        %v726 = vsel %vm725, %v720, %v724
        %v727 = vmul.f32 %v716, %v726
        %v728 = vmul.f32 %v719, %v726
        %v729 = vsub.f32 %v709, %v727
        %v730 = vsub.f32 %v710, %v728
        %v731 = vmul.f32 %v729, %v729
        %v732 = vmul.f32 %v730, %v730
        %v733 = vsel %vm713, %v731, 0.0
        %734 = vadd.xlane.f32.xlu0 %v733
        %v735 = vpop.xlane.xlu0 %734
        %v736 = vsel %vm713, %v732, 0.0
        %737 = vadd.xlane.f32.xlu0 %v736
        %v738 = vpop.xlane.xlu0 %737
        %v739 = vmul.f32 %v735, %v726
        %v740 = vmul.f32 %v738, %v726
        %v741 = vadd.f32 %v739, 1e-05
        %v742 = vadd.f32 %v740, 1e-05
        %v743 = vrsqrt.pop %v741
        %v744 = vmul.f32 %v743, %v741
        %v745 = vmul.f32 %v744, %v743
        %v746 = vmul.f32 0.5, %v745
        %v747 = vsub.f32 1.5, %v746
        %v748 = vmul.f32 %v743, %v747
        %vm749 = vweird.f32 %v741
        %vm750 = vweird.f32 %v743
        %vm751 = vmor %vm749, %vm750
        %v752 = vsel %vm751, %v743, %v748
        %v753 = vrsqrt.pop %v742
        %v754 = vmul.f32 %v753, %v742
        %v755 = vmul.f32 %v754, %v753
        %v756 = vmul.f32 0.5, %v755
        %v757 = vsub.f32 1.5, %v756
        %v758 = vmul.f32 %v753, %v757
        %vm759 = vweird.f32 %v742
        %vm760 = vweird.f32 %v753
        %vm761 = vmor %vm759, %vm760
        %v762 = vsel %vm761, %v753, %v758
        %v763 = vmul.f32 %v729, %v752
        %v764 = vmul.f32 %v730, %v762
        %v766 = vperm.slane %v711, 0
        %v768 = vmul.f32 %v763, %v766
        %v769 = vmul.f32 %v764, %v766
        %v771 = vperm.slane %v712, 0
        %v773 = vadd.f32 %v768, %v771
        %v774 = vadd.f32 %v769, %v771
        %v775 = vpack.c.bf16 %v774, %v773
        %v776 = vld [vmem:[%s662] sm:$0xff]
        %v777 = vld [vmem:[%s662 + $0x8] sm:$0xff]
        %v778 = vld [vmem:[%s662 + $0x10] sm:$0xff]
        %v779 = vld [vmem:[%s662 + $0x18] sm:$0xff]
        %v780 = vld [vmem:[%s662 + $0x20] sm:$0xff]
        %v781 = vld [vmem:[%s662 + $0x28] sm:$0xff]
        %v782 = vld [vmem:[%s662 + $0x30] sm:$0xff]
        %v783 = vld [vmem:[%s662 + $0x38] sm:$0xff]
        %v784 = vld [vmem:[%s666] sm:$0x3]
        %v786 = vperm.slane %v784, 0
        %v787 = vperm.slane %v784, 1
        %v798 = vunpack.c.l.b16 %v776
        %v799 = vunpack.c.h.b16 %v776
        %v800 = vunpack.c.l.b16 %v777
        %v801 = vunpack.c.h.b16 %v777
        %v802 = vunpack.c.l.b16 %v778
        %v803 = vunpack.c.h.b16 %v778
        %v804 = vunpack.c.l.b16 %v779
        %v805 = vunpack.c.h.b16 %v779
        %v806 = vunpack.c.l.b16 %v780
        %v807 = vunpack.c.h.b16 %v780
        %v808 = vunpack.c.l.b16 %v781
        %v809 = vunpack.c.h.b16 %v781
        %v810 = vunpack.c.l.b16 %v782
        %v811 = vunpack.c.h.b16 %v782
        %v812 = vunpack.c.l.b16 %v783
        %v813 = vunpack.c.h.b16 %v783
        %v814 = vpack.c.b16 %v800, %v798
        %v815 = vpack.c.b16 %v801, %v799
        %v816 = vpack.c.b16 %v804, %v802
        %v817 = vpack.c.b16 %v805, %v803
        %v818 = vpack.c.b16 %v808, %v806
        %v819 = vpack.c.b16 %v809, %v807
        %v820 = vpack.c.b16 %v812, %v810
        %v821 = vpack.c.b16 %v813, %v811
        %v831 = vsel %vm713, %v775, 0
        %833 = vmatpush.bf16.msra.mxu0 0
        %834 = vmatpush.bf16.msra.mxu0 0
        %835 = vmatpush.bf16.msra.mxu0 0
        %836 = vmatpush.bf16.msra.mxu0 0
        %837 = vmatpush.bf16.msra.mxu0 %v820
        %838 = vmatpush.bf16.msra.mxu0 %v818
        %839 = vmatpush.bf16.msra.mxu0 %v816
        %840 = vmatpush.bf16.msra.mxu0 %v814
        %841 = vmatmul.bf16.gmra.mxu0 %v831
        %v842 = vpop.f32.mrf.mxu0
        %v843 = vadd.f32 %v786, %v842
        %v844 = vpop.f32.mrf.mxu0
        %v845 = vadd.f32 %v786, %v844
        %846 = vdwg.mxu0
        %847 = vmatpush.bf16.msra.mxu0 0
        %848 = vmatpush.bf16.msra.mxu0 0
        %849 = vmatpush.bf16.msra.mxu0 0
        %850 = vmatpush.bf16.msra.mxu0 0
        %851 = vmatpush.bf16.msra.mxu0 %v821
        %852 = vmatpush.bf16.msra.mxu0 %v819
        %853 = vmatpush.bf16.msra.mxu0 %v817
        %854 = vmatpush.bf16.msra.mxu0 %v815
        %855 = vmatmul.bf16.gmra.mxu0 %v831
        %v856 = vpop.f32.mrf.mxu0
        %v857 = vadd.f32 %v787, %v856
        %v858 = vpop.f32.mrf.mxu0
        %v859 = vadd.f32 %v787, %v858
        %860 = vdwg.mxu0
        %v861 = vlaneseq
        %v862 = vshrl.u32 %v861, 7
        %v863 = vlaneseq
        %v864 = vand.u32 %v863, 127
        %vm865 = vcmp.le.s32.totalorder %v864, %v862
        %v866 = vmul.f32 %v843, 0.25
        %v867 = vmul.f32 %v845, 0.25
        %v868 = vpack.c.bf16 %v866, %v866
        %v869 = vpack.c.bf16 %v867, %v867
        %v870 = vpack.c.bf16 %v843, %v843
        %v871 = vpack.c.bf16 %v845, %v845
        %v873 = vunpack.c.l.b16 %v870
        %v874 = vpack.c.b16 %v873, %v873
        %875 = vrot.lane.b32.xlu0 %v874, 64
        %v876 = vpop.permute.xlu0 %875
        %vm877 = vcmask 130048
        %v879 = vsel %vm877, %v868, 0
        %v882 = vsel %vm877, %v876, 0
        %884 = vmatpush.bf16.xpose.msra.mxu0 0
        %885 = vmatpush.bf16.xpose.msra.mxu0 0
        %886 = vmatpush.bf16.xpose.msra.mxu0 0
        %887 = vmatpush.bf16.xpose.msra.mxu0 0
        %888 = vmatpush.bf16.xpose.msra.mxu0 0
        %889 = vmatpush.bf16.xpose.msra.mxu0 0
        %890 = vmatpush.bf16.xpose.msra.mxu0 0
        %891 = vmatpush.bf16.xpose.msra.mxu0 %v882
        %892 = vmatmul.bf16.gmra.mxu0 %v879
        %v893 = vpop.f32.mrf.mxu0
        %v894 = vadd.f32 0.0, %v893
        %v895 = vpop.f32.mrf.mxu0
        %896 = vdwg.mxu0
        %v898 = vunpack.c.l.b16 %v871
        %v899 = vpack.c.b16 %v898, %v898
        %900 = vrot.lane.b32.xlu0 %v899, 64
        %v901 = vpop.permute.xlu0 %900
        %v903 = vsel %vm877, %v869, 0
        %v906 = vsel %vm877, %v901, 0
        %908 = vmatpush.bf16.xpose.msra.mxu0 0
        %909 = vmatpush.bf16.xpose.msra.mxu0 0
        %910 = vmatpush.bf16.xpose.msra.mxu0 0
        %911 = vmatpush.bf16.xpose.msra.mxu0 0
        %912 = vmatpush.bf16.xpose.msra.mxu0 0
        %913 = vmatpush.bf16.xpose.msra.mxu0 0
        %914 = vmatpush.bf16.xpose.msra.mxu0 0
        %915 = vmatpush.bf16.xpose.msra.mxu0 %v906
        %916 = vmatmul.bf16.gmra.mxu0 %v903
        %v917 = vpop.f32.mrf.mxu0
        %v918 = vadd.f32 0.0, %v917
        %v919 = vpop.f32.mrf.mxu0
        %920 = vdwg.mxu0
        %v921 = vsel %vm865, 1, 0
        %vm922 = vcmp.eq.s32.totalorder %v921, 1
        %v923 = vsel %vm922, %v894, -1e+09
        %v924 = vsel %vm922, %v918, -1e+09
        %vm925 = vcmask 64512
        %v926 = vsel %vm925, %v923, -inf
        %927 = vmax.xlane.f32.xlu0 %v926
        %v928 = vpop.xlane.xlu0 %927
        %v929 = vsel %vm925, %v924, -inf
        %930 = vmax.xlane.f32.xlu0 %v929
        %v931 = vpop.xlane.xlu0 %930
        %v932 = vsub.f32 %v923, %v928
        %v933 = vsub.f32 %v924, %v931
        %v934 = vmul.f32 %v932, 1.442695
        %v935 = vpow.pop %v934
        %v936 = vmul.f32 %v933, 1.442695
        %v937 = vpow.pop %v936
        %v938 = vsel %vm925, %v935, 0.0
        %939 = vadd.xlane.f32.xlu0 %v938
        %v940 = vpop.xlane.xlu0 %939
        %v941 = vsel %vm925, %v937, 0.0
        %942 = vadd.xlane.f32.xlu0 %v941
        %v943 = vpop.xlane.xlu0 %942
        %v944 = vrcp.pop %v940
        %v945 = vrcp.pop %v943
        %v946 = vmul.f32 %v935, %v944
        %v947 = vmul.f32 %v937, %v945
        %v948 = vpack.c.bf16 %v946, %v946
        %v949 = vpack.c.bf16 %v947, %v947
        %v950 = vpack.c.bf16 %v857, %v857
        %v951 = vpack.c.bf16 %v859, %v859
        %v953 = vsel %vm925, %v948, 0
        %vm955 = vcmask 1043456
        %v957 = vsel %vm955, %v950, 0
        %959 = vmatpush.bf16.msra.mxu0 0
        %960 = vmatpush.bf16.msra.mxu0 0
        %961 = vmatpush.bf16.msra.mxu0 0
        %962 = vmatpush.bf16.msra.mxu0 0
        %963 = vmatpush.bf16.msra.mxu0 0
        %964 = vmatpush.bf16.msra.mxu0 0
        %965 = vmatpush.bf16.msra.mxu0 0
        %966 = vmatpush.bf16.msra.mxu0 %v957
        %967 = vmatmul.bf16.gmra.mxu0 %v953
        %v968 = vpop.f32.mrf.mxu0
        %v969 = vadd.f32 0.0, %v968
        %v970 = vpop.f32.mrf.mxu0
        %971 = vdwg.mxu0
        %v973 = vsel %vm925, %v949, 0
        %v976 = vsel %vm955, %v951, 0
        %978 = vmatpush.bf16.msra.mxu0 0
        %979 = vmatpush.bf16.msra.mxu0 0
        %980 = vmatpush.bf16.msra.mxu0 0
        %981 = vmatpush.bf16.msra.mxu0 0
        %982 = vmatpush.bf16.msra.mxu0 0
        %983 = vmatpush.bf16.msra.mxu0 0
        %984 = vmatpush.bf16.msra.mxu0 0
        %985 = vmatpush.bf16.msra.mxu0 %v976
        %986 = vmatmul.bf16.gmra.mxu0 %v973
        %v987 = vpop.f32.mrf.mxu0
        %v988 = vadd.f32 0.0, %v987
        %v989 = vpop.f32.mrf.mxu0
        %990 = vdwg.mxu0
        %991 = vst.msk [vmem:[#allocation3] sm:$0xff] %vm877, %v969
        %992 = vst.msk [vmem:[#allocation3 + $0x8] sm:$0xff] %vm877, %v988
        %v994 = vunpack.c.l.b16 %v868
        %v995 = vpack.c.b16 %v994, %v994
        %996 = vrot.lane.b32.xlu0 %v995, 112
        %v997 = vpop.permute.xlu0 %996
        %998 = vrot.lane.b32.xlu0 %v874, 48
        %v999 = vpop.permute.xlu0 %998
        %v1001 = vsel %vm877, %v997, 0
        %v1004 = vsel %vm877, %v999, 0
        %1006 = vmatpush.bf16.xpose.msra.mxu0 0
        %1007 = vmatpush.bf16.xpose.msra.mxu0 0
        %1008 = vmatpush.bf16.xpose.msra.mxu0 0
        %1009 = vmatpush.bf16.xpose.msra.mxu0 0
        %1010 = vmatpush.bf16.xpose.msra.mxu0 0
        %1011 = vmatpush.bf16.xpose.msra.mxu0 0
        %1012 = vmatpush.bf16.xpose.msra.mxu0 0
        %1013 = vmatpush.bf16.xpose.msra.mxu0 %v1004
        %1014 = vmatmul.bf16.gmra.mxu0 %v1001
        %v1015 = vpop.f32.mrf.mxu0
        %v1016 = vadd.f32 0.0, %v1015
        %v1017 = vpop.f32.mrf.mxu0
        %1018 = vdwg.mxu0
        %v1020 = vunpack.c.l.b16 %v869
        %v1021 = vpack.c.b16 %v1020, %v1020
        %1022 = vrot.lane.b32.xlu0 %v1021, 112
        %v1023 = vpop.permute.xlu0 %1022
        %1024 = vrot.lane.b32.xlu0 %v899, 48
        %v1025 = vpop.permute.xlu0 %1024
        %v1027 = vsel %vm877, %v1023, 0
        %v1030 = vsel %vm877, %v1025, 0
        %1032 = vmatpush.bf16.xpose.msra.mxu0 0
        %1033 = vmatpush.bf16.xpose.msra.mxu0 0
        %1034 = vmatpush.bf16.xpose.msra.mxu0 0
        %1035 = vmatpush.bf16.xpose.msra.mxu0 0
        %1036 = vmatpush.bf16.xpose.msra.mxu0 0
        %1037 = vmatpush.bf16.xpose.msra.mxu0 0
        %1038 = vmatpush.bf16.xpose.msra.mxu0 0
        %1039 = vmatpush.bf16.xpose.msra.mxu0 %v1030
        %1040 = vmatmul.bf16.gmra.mxu0 %v1027
        %v1041 = vpop.f32.mrf.mxu0
        %v1042 = vadd.f32 0.0, %v1041
        %v1043 = vpop.f32.mrf.mxu0
        %1044 = vdwg.mxu0
        %v1045 = vsel %vm922, %v1016, -1e+09
        %v1046 = vsel %vm922, %v1042, -1e+09
        %v1047 = vsel %vm925, %v1045, -inf
        %1048 = vmax.xlane.f32.xlu0 %v1047
        %v1049 = vpop.xlane.xlu0 %1048
        %v1050 = vsel %vm925, %v1046, -inf
        %1051 = vmax.xlane.f32.xlu0 %v1050
        %v1052 = vpop.xlane.xlu0 %1051
        %v1053 = vsub.f32 %v1045, %v1049
        %v1054 = vsub.f32 %v1046, %v1052
        %v1055 = vmul.f32 %v1053, 1.442695
        %v1056 = vpow.pop %v1055
        %v1057 = vmul.f32 %v1054, 1.442695
        %v1058 = vpow.pop %v1057
        %v1059 = vsel %vm925, %v1056, 0.0
        %1060 = vadd.xlane.f32.xlu0 %v1059
        %v1061 = vpop.xlane.xlu0 %1060
        %v1062 = vsel %vm925, %v1058, 0.0
        %1063 = vadd.xlane.f32.xlu0 %v1062
        %v1064 = vpop.xlane.xlu0 %1063
        %v1065 = vrcp.pop %v1061
        %v1066 = vrcp.pop %v1064
        %v1067 = vmul.f32 %v1056, %v1065
        %v1068 = vmul.f32 %v1058, %v1066
        %v1069 = vpack.c.bf16 %v1067, %v1067
        %v1070 = vpack.c.bf16 %v1068, %v1068
        %v1072 = vunpack.c.l.b16 %v950
        %v1073 = vpack.c.b16 %v1072, %v1072
        %1074 = vrot.lane.b32.xlu0 %v1073, 112
        %v1075 = vpop.permute.xlu0 %1074
        %v1077 = vsel %vm925, %v1069, 0
        %v1080 = vsel %vm955, %v1075, 0
        %1082 = vmatpush.bf16.msra.mxu0 0
        %1083 = vmatpush.bf16.msra.mxu0 0
        %1084 = vmatpush.bf16.msra.mxu0 0
        %1085 = vmatpush.bf16.msra.mxu0 0
        %1086 = vmatpush.bf16.msra.mxu0 0
        %1087 = vmatpush.bf16.msra.mxu0 0
        %1088 = vmatpush.bf16.msra.mxu0 0
        %1089 = vmatpush.bf16.msra.mxu0 %v1080
        %1090 = vmatmul.bf16.gmra.mxu0 %v1077
        %v1091 = vpop.f32.mrf.mxu0
        %v1092 = vadd.f32 0.0, %v1091
        %v1093 = vpop.f32.mrf.mxu0
        %1094 = vdwg.mxu0
        %v1096 = vunpack.c.l.b16 %v951
        %v1097 = vpack.c.b16 %v1096, %v1096
        %1098 = vrot.lane.b32.xlu0 %v1097, 112
        %v1099 = vpop.permute.xlu0 %1098
        %v1101 = vsel %vm925, %v1070, 0
        %v1104 = vsel %vm955, %v1099, 0
        %1106 = vmatpush.bf16.msra.mxu0 0
        %1107 = vmatpush.bf16.msra.mxu0 0
        %1108 = vmatpush.bf16.msra.mxu0 0
        %1109 = vmatpush.bf16.msra.mxu0 0
        %1110 = vmatpush.bf16.msra.mxu0 0
        %1111 = vmatpush.bf16.msra.mxu0 0
        %1112 = vmatpush.bf16.msra.mxu0 0
        %1113 = vmatpush.bf16.msra.mxu0 %v1104
        %1114 = vmatmul.bf16.gmra.mxu0 %v1101
        %v1115 = vpop.f32.mrf.mxu0
        %v1116 = vadd.f32 0.0, %v1115
        %v1117 = vpop.f32.mrf.mxu0
        %1118 = vdwg.mxu0
        %1121 = vrot.lane.b32.xlu0 %v1092, 16
        %v1122 = vpop.permute.xlu0 %1121
        %1123 = vrot.lane.b32.xlu0 %v1116, 16
        %v1124 = vpop.permute.xlu0 %1123
        %vm1127 = vcmask 261248
        %1128 = vst.msk [vmem:[#allocation3] sm:$0xff] %vm1127, %v1122
        %1129 = vst.msk [vmem:[#allocation3 + $0x8] sm:$0xff] %vm1127, %v1124
        %1130 = vrot.lane.b32.xlu0 %v995, 96
        %v1131 = vpop.permute.xlu0 %1130
        %1132 = vrot.lane.b32.xlu0 %v874, 32
        %v1133 = vpop.permute.xlu0 %1132
        %v1135 = vsel %vm877, %v1131, 0
        %v1138 = vsel %vm877, %v1133, 0
        %1140 = vmatpush.bf16.xpose.msra.mxu0 0
        %1141 = vmatpush.bf16.xpose.msra.mxu0 0
        %1142 = vmatpush.bf16.xpose.msra.mxu0 0
        %1143 = vmatpush.bf16.xpose.msra.mxu0 0
        %1144 = vmatpush.bf16.xpose.msra.mxu0 0
        %1145 = vmatpush.bf16.xpose.msra.mxu0 0
        %1146 = vmatpush.bf16.xpose.msra.mxu0 0
        %1147 = vmatpush.bf16.xpose.msra.mxu0 %v1138
        %1148 = vmatmul.bf16.gmra.mxu0 %v1135
        %v1149 = vpop.f32.mrf.mxu0
        %v1150 = vadd.f32 0.0, %v1149
        %v1151 = vpop.f32.mrf.mxu0
        %1152 = vdwg.mxu0
        %1153 = vrot.lane.b32.xlu0 %v1021, 96
        %v1154 = vpop.permute.xlu0 %1153
        %1155 = vrot.lane.b32.xlu0 %v899, 32
        %v1156 = vpop.permute.xlu0 %1155
        %v1158 = vsel %vm877, %v1154, 0
        %v1161 = vsel %vm877, %v1156, 0
        %1163 = vmatpush.bf16.xpose.msra.mxu0 0
        %1164 = vmatpush.bf16.xpose.msra.mxu0 0
        %1165 = vmatpush.bf16.xpose.msra.mxu0 0
        %1166 = vmatpush.bf16.xpose.msra.mxu0 0
        %1167 = vmatpush.bf16.xpose.msra.mxu0 0
        %1168 = vmatpush.bf16.xpose.msra.mxu0 0
        %1169 = vmatpush.bf16.xpose.msra.mxu0 0
        %1170 = vmatpush.bf16.xpose.msra.mxu0 %v1161
        %1171 = vmatmul.bf16.gmra.mxu0 %v1158
        %v1172 = vpop.f32.mrf.mxu0
        %v1173 = vadd.f32 0.0, %v1172
        %v1174 = vpop.f32.mrf.mxu0
        %1175 = vdwg.mxu0
        %v1176 = vsel %vm922, %v1150, -1e+09
        %v1177 = vsel %vm922, %v1173, -1e+09
        %v1178 = vsel %vm925, %v1176, -inf
        %1179 = vmax.xlane.f32.xlu0 %v1178
        %v1180 = vpop.xlane.xlu0 %1179
        %v1181 = vsel %vm925, %v1177, -inf
        %1182 = vmax.xlane.f32.xlu0 %v1181
        %v1183 = vpop.xlane.xlu0 %1182
        %v1184 = vsub.f32 %v1176, %v1180
        %v1185 = vsub.f32 %v1177, %v1183
        %v1186 = vmul.f32 %v1184, 1.442695
        %v1187 = vpow.pop %v1186
        %v1188 = vmul.f32 %v1185, 1.442695
        %v1189 = vpow.pop %v1188
        %v1190 = vsel %vm925, %v1187, 0.0
        %1191 = vadd.xlane.f32.xlu0 %v1190
        %v1192 = vpop.xlane.xlu0 %1191
        %v1193 = vsel %vm925, %v1189, 0.0
        %1194 = vadd.xlane.f32.xlu0 %v1193
        %v1195 = vpop.xlane.xlu0 %1194
        %v1196 = vrcp.pop %v1192
        %v1197 = vrcp.pop %v1195
        %v1198 = vmul.f32 %v1187, %v1196
        %v1199 = vmul.f32 %v1189, %v1197
        %v1200 = vpack.c.bf16 %v1198, %v1198
        %v1201 = vpack.c.bf16 %v1199, %v1199
        %1202 = vrot.lane.b32.xlu0 %v1073, 96
        %v1203 = vpop.permute.xlu0 %1202
        %v1205 = vsel %vm925, %v1200, 0
        %v1208 = vsel %vm955, %v1203, 0
        %1210 = vmatpush.bf16.msra.mxu0 0
        %1211 = vmatpush.bf16.msra.mxu0 0
        %1212 = vmatpush.bf16.msra.mxu0 0
        %1213 = vmatpush.bf16.msra.mxu0 0
        %1214 = vmatpush.bf16.msra.mxu0 0
        %1215 = vmatpush.bf16.msra.mxu0 0
        %1216 = vmatpush.bf16.msra.mxu0 0
        %1217 = vmatpush.bf16.msra.mxu0 %v1208
        %1218 = vmatmul.bf16.gmra.mxu0 %v1205
        %v1219 = vpop.f32.mrf.mxu0
        %v1220 = vadd.f32 0.0, %v1219
        %v1221 = vpop.f32.mrf.mxu0
        %1222 = vdwg.mxu0
        %1223 = vrot.lane.b32.xlu0 %v1097, 96
        %v1224 = vpop.permute.xlu0 %1223
        %v1226 = vsel %vm925, %v1201, 0
        %v1229 = vsel %vm955, %v1224, 0
        %1231 = vmatpush.bf16.msra.mxu0 0
        %1232 = vmatpush.bf16.msra.mxu0 0
        %1233 = vmatpush.bf16.msra.mxu0 0
        %1234 = vmatpush.bf16.msra.mxu0 0
        %1235 = vmatpush.bf16.msra.mxu0 0
        %1236 = vmatpush.bf16.msra.mxu0 0
        %1237 = vmatpush.bf16.msra.mxu0 0
        %1238 = vmatpush.bf16.msra.mxu0 %v1229
        %1239 = vmatmul.bf16.gmra.mxu0 %v1226
        %v1240 = vpop.f32.mrf.mxu0
        %v1241 = vadd.f32 0.0, %v1240
        %v1242 = vpop.f32.mrf.mxu0
        %1243 = vdwg.mxu0
        %1246 = vrot.lane.b32.xlu0 %v1220, 32
        %v1247 = vpop.permute.xlu0 %1246
        %1248 = vrot.lane.b32.xlu0 %v1241, 32
        %v1249 = vpop.permute.xlu0 %1248
        %vm1252 = vcmask 392448
        %1253 = vst.msk [vmem:[#allocation3] sm:$0xff] %vm1252, %v1247
        %1254 = vst.msk [vmem:[#allocation3 + $0x8] sm:$0xff] %vm1252, %v1249
        %1255 = vrot.lane.b32.xlu0 %v995, 80
        %v1256 = vpop.permute.xlu0 %1255
        %1257 = vrot.lane.b32.xlu0 %v874, 16
        %v1258 = vpop.permute.xlu0 %1257
        %v1260 = vsel %vm877, %v1256, 0
        %v1263 = vsel %vm877, %v1258, 0
        %1265 = vmatpush.bf16.xpose.msra.mxu0 0
        %1266 = vmatpush.bf16.xpose.msra.mxu0 0
        %1267 = vmatpush.bf16.xpose.msra.mxu0 0
        %1268 = vmatpush.bf16.xpose.msra.mxu0 0
        %1269 = vmatpush.bf16.xpose.msra.mxu0 0
        %1270 = vmatpush.bf16.xpose.msra.mxu0 0
        %1271 = vmatpush.bf16.xpose.msra.mxu0 0
        %1272 = vmatpush.bf16.xpose.msra.mxu0 %v1263
        %1273 = vmatmul.bf16.gmra.mxu0 %v1260
        %v1274 = vpop.f32.mrf.mxu0
        %v1275 = vadd.f32 0.0, %v1274
        %v1276 = vpop.f32.mrf.mxu0
        %1277 = vdwg.mxu0
        %1278 = vrot.lane.b32.xlu0 %v1021, 80
        %v1279 = vpop.permute.xlu0 %1278
        %1280 = vrot.lane.b32.xlu0 %v899, 16
        %v1281 = vpop.permute.xlu0 %1280
        %v1283 = vsel %vm877, %v1279, 0
        %v1286 = vsel %vm877, %v1281, 0
        %1288 = vmatpush.bf16.xpose.msra.mxu0 0
        %1289 = vmatpush.bf16.xpose.msra.mxu0 0
        %1290 = vmatpush.bf16.xpose.msra.mxu0 0
        %1291 = vmatpush.bf16.xpose.msra.mxu0 0
        %1292 = vmatpush.bf16.xpose.msra.mxu0 0
        %1293 = vmatpush.bf16.xpose.msra.mxu0 0
        %1294 = vmatpush.bf16.xpose.msra.mxu0 0
        %1295 = vmatpush.bf16.xpose.msra.mxu0 %v1286
        %1296 = vmatmul.bf16.gmra.mxu0 %v1283
        %v1297 = vpop.f32.mrf.mxu0
        %v1298 = vadd.f32 0.0, %v1297
        %v1299 = vpop.f32.mrf.mxu0
        %1300 = vdwg.mxu0
        %v1301 = vsel %vm922, %v1275, -1e+09
        %v1302 = vsel %vm922, %v1298, -1e+09
        %v1303 = vsel %vm925, %v1301, -inf
        %1304 = vmax.xlane.f32.xlu0 %v1303
        %v1305 = vpop.xlane.xlu0 %1304
        %v1306 = vsel %vm925, %v1302, -inf
        %1307 = vmax.xlane.f32.xlu0 %v1306
        %v1308 = vpop.xlane.xlu0 %1307
        %v1309 = vsub.f32 %v1301, %v1305
        %v1310 = vsub.f32 %v1302, %v1308
        %v1311 = vmul.f32 %v1309, 1.442695
        %v1312 = vpow.pop %v1311
        %v1313 = vmul.f32 %v1310, 1.442695
        %v1314 = vpow.pop %v1313
        %v1315 = vsel %vm925, %v1312, 0.0
        %1316 = vadd.xlane.f32.xlu0 %v1315
        %v1317 = vpop.xlane.xlu0 %1316
        %v1318 = vsel %vm925, %v1314, 0.0
        %1319 = vadd.xlane.f32.xlu0 %v1318
        %v1320 = vpop.xlane.xlu0 %1319
        %v1321 = vrcp.pop %v1317
        %v1322 = vrcp.pop %v1320
        %v1323 = vmul.f32 %v1312, %v1321
        %v1324 = vmul.f32 %v1314, %v1322
        %v1325 = vpack.c.bf16 %v1323, %v1323
        %v1326 = vpack.c.bf16 %v1324, %v1324
        %1327 = vrot.lane.b32.xlu0 %v1073, 80
        %v1328 = vpop.permute.xlu0 %1327
        %v1330 = vsel %vm925, %v1325, 0
        %v1333 = vsel %vm955, %v1328, 0
        %1335 = vmatpush.bf16.msra.mxu0 0
        %1336 = vmatpush.bf16.msra.mxu0 0
        %1337 = vmatpush.bf16.msra.mxu0 0
        %1338 = vmatpush.bf16.msra.mxu0 0
        %1339 = vmatpush.bf16.msra.mxu0 0
        %1340 = vmatpush.bf16.msra.mxu0 0
        %1341 = vmatpush.bf16.msra.mxu0 0
        %1342 = vmatpush.bf16.msra.mxu0 %v1333
        %1343 = vmatmul.bf16.gmra.mxu0 %v1330
        %v1344 = vpop.f32.mrf.mxu0
        %v1345 = vadd.f32 0.0, %v1344
        %v1346 = vpop.f32.mrf.mxu0
        %1347 = vdwg.mxu0
        %1348 = vrot.lane.b32.xlu0 %v1097, 80
        %v1349 = vpop.permute.xlu0 %1348
        %v1351 = vsel %vm925, %v1326, 0
        %v1354 = vsel %vm955, %v1349, 0
        %1356 = vmatpush.bf16.msra.mxu0 0
        %1357 = vmatpush.bf16.msra.mxu0 0
        %1358 = vmatpush.bf16.msra.mxu0 0
        %1359 = vmatpush.bf16.msra.mxu0 0
        %1360 = vmatpush.bf16.msra.mxu0 0
        %1361 = vmatpush.bf16.msra.mxu0 0
        %1362 = vmatpush.bf16.msra.mxu0 0
        %1363 = vmatpush.bf16.msra.mxu0 %v1354
        %1364 = vmatmul.bf16.gmra.mxu0 %v1351
        %v1365 = vpop.f32.mrf.mxu0
        %v1366 = vadd.f32 0.0, %v1365
        %v1367 = vpop.f32.mrf.mxu0
        %1368 = vdwg.mxu0
        %1371 = vrot.lane.b32.xlu0 %v1345, 48
        %v1372 = vpop.permute.xlu0 %1371
        %1373 = vrot.lane.b32.xlu0 %v1366, 48
        %v1374 = vpop.permute.xlu0 %1373
        %vm1377 = vcmask 523648
        %1378 = vst.msk [vmem:[#allocation3] sm:$0xff] %vm1377, %v1372
        %1379 = vst.msk [vmem:[#allocation3 + $0x8] sm:$0xff] %vm1377, %v1374
        %v1380 = vld [vmem:[#allocation3] sm:$0xff]
        %v1381 = vld [vmem:[#allocation3 + $0x8] sm:$0xff]
        %v1382 = vpack.c.bf16 %v1381, %v1380
        %v1383 = vld [vmem:[%s671] sm:$0xf]
        %v1384 = vld [vmem:[%s671 + $0x4] sm:$0xf]
        %v1385 = vld [vmem:[%s671 + $0x8] sm:$0xf]
        %v1386 = vld [vmem:[%s671 + $0xc] sm:$0xf]
        %v1387 = vld [vmem:[%s671 + $0x10] sm:$0xf]
        %v1388 = vld [vmem:[%s671 + $0x14] sm:$0xf]
        %v1389 = vld [vmem:[%s671 + $0x18] sm:$0xf]
        %v1390 = vld [vmem:[%s671 + $0x1c] sm:$0xf]
        %v1391 = vld [vmem:[%s674] sm:$0x1]
        %v1393 = vperm.slane %v1391, 0
        %v1403 = vunpack.c.l.b16 %v1383
        %v1404 = vunpack.c.l.b16 %v1384
        %v1405 = vunpack.c.l.b16 %v1385
        %v1406 = vunpack.c.l.b16 %v1386
        %v1407 = vunpack.c.l.b16 %v1387
        %v1408 = vunpack.c.l.b16 %v1388
        %v1409 = vunpack.c.l.b16 %v1389
        %v1410 = vunpack.c.l.b16 %v1390
        %v1411 = vpack.c.b16 %v1404, %v1403
        %v1412 = vpack.c.b16 %v1406, %v1405
        %v1413 = vpack.c.b16 %v1408, %v1407
        %v1414 = vpack.c.b16 %v1410, %v1409
        %v1420 = vsel %vm713, %v1382, 0
        %1422 = vmatpush.bf16.msra.mxu0 0
        %1423 = vmatpush.bf16.msra.mxu0 0
        %1424 = vmatpush.bf16.msra.mxu0 0
        %1425 = vmatpush.bf16.msra.mxu0 0
        %1426 = vmatpush.bf16.msra.mxu0 %v1414
        %1427 = vmatpush.bf16.msra.mxu0 %v1413
        %1428 = vmatpush.bf16.msra.mxu0 %v1412
        %1429 = vmatpush.bf16.msra.mxu0 %v1411
        %1430 = vmatmul.bf16.gmra.mxu0 %v1420
        %v1431 = vpop.f32.mrf.mxu0
        %v1432 = vadd.f32 %v1393, %v1431
        %v1433 = vpop.f32.mrf.mxu0
        %v1434 = vadd.f32 %v1393, %v1433
        %1435 = vdwg.mxu0
        %v1436 = vadd.f32 %v709, %v1432
        %v1437 = vadd.f32 %v710, %v1434
        %v1438 = vld [vmem:[%s677] sm:$0x1]
        %v1439 = vld [vmem:[%s680] sm:$0x1]
        %v1440 = vsel %vm713, %v1436, 0.0
        %1441 = vadd.xlane.f32.xlu0 %v1440
        %v1442 = vpop.xlane.xlu0 %1441
        %v1443 = vsel %vm713, %v1437, 0.0
        %1444 = vadd.xlane.f32.xlu0 %v1443
        %v1445 = vpop.xlane.xlu0 %1444
        %v1446 = vmul.f32 %v1442, %v726
        %v1447 = vmul.f32 %v1445, %v726
        %v1448 = vsub.f32 %v1436, %v1446
        %v1449 = vsub.f32 %v1437, %v1447
        %v1450 = vmul.f32 %v1448, %v1448
        %v1451 = vmul.f32 %v1449, %v1449
        %v1452 = vsel %vm713, %v1450, 0.0
        %1453 = vadd.xlane.f32.xlu0 %v1452
        %v1454 = vpop.xlane.xlu0 %1453
        %v1455 = vsel %vm713, %v1451, 0.0
        %1456 = vadd.xlane.f32.xlu0 %v1455
        %v1457 = vpop.xlane.xlu0 %1456
        %v1458 = vmul.f32 %v1454, %v726
        %v1459 = vmul.f32 %v1457, %v726
        %v1460 = vadd.f32 %v1458, 1e-05
        %v1461 = vadd.f32 %v1459, 1e-05
        %v1462 = vrsqrt.pop %v1460
        %v1463 = vmul.f32 %v1462, %v1460
        %v1464 = vmul.f32 %v1463, %v1462
        %v1465 = vmul.f32 0.5, %v1464
        %v1466 = vsub.f32 1.5, %v1465
        %v1467 = vmul.f32 %v1462, %v1466
        %vm1468 = vweird.f32 %v1460
        %vm1469 = vweird.f32 %v1462
        %vm1470 = vmor %vm1468, %vm1469
        %v1471 = vsel %vm1470, %v1462, %v1467
        %v1472 = vrsqrt.pop %v1461
        %v1473 = vmul.f32 %v1472, %v1461
        %v1474 = vmul.f32 %v1473, %v1472
        %v1475 = vmul.f32 0.5, %v1474
        %v1476 = vsub.f32 1.5, %v1475
        %v1477 = vmul.f32 %v1472, %v1476
        %vm1478 = vweird.f32 %v1461
        %vm1479 = vweird.f32 %v1472
        %vm1480 = vmor %vm1478, %vm1479
        %v1481 = vsel %vm1480, %v1472, %v1477
        %v1482 = vmul.f32 %v1448, %v1471
        %v1483 = vmul.f32 %v1449, %v1481
        %v1485 = vperm.slane %v1438, 0
        %v1487 = vmul.f32 %v1482, %v1485
        %v1488 = vmul.f32 %v1483, %v1485
        %v1490 = vperm.slane %v1439, 0
        %v1492 = vadd.f32 %v1487, %v1490
        %v1493 = vadd.f32 %v1488, %v1490
        %v1494 = vpack.c.bf16 %v1493, %v1492
        %v1495 = vld [vmem:[%s685] sm:$0xff]
        %v1496 = vld [vmem:[%s685 + $0x8] sm:$0xff]
        %v1497 = vld [vmem:[%s685 + $0x10] sm:$0xff]
        %v1498 = vld [vmem:[%s685 + $0x18] sm:$0xff]
        %v1499 = vld [vmem:[%s685 + $0x20] sm:$0xff]
        %v1500 = vld [vmem:[%s685 + $0x28] sm:$0xff]
        %v1501 = vld [vmem:[%s685 + $0x30] sm:$0xff]
        %v1502 = vld [vmem:[%s685 + $0x38] sm:$0xff]
        %v1503 = vld [vmem:[%s689] sm:$0x3]
        %v1505 = vperm.slane %v1503, 0
        %v1506 = vperm.slane %v1503, 1
        %v1517 = vunpack.c.l.b16 %v1495
        %v1518 = vunpack.c.h.b16 %v1495
        %v1519 = vunpack.c.l.b16 %v1496
        %v1520 = vunpack.c.h.b16 %v1496
        %v1521 = vunpack.c.l.b16 %v1497
        %v1522 = vunpack.c.h.b16 %v1497
        %v1523 = vunpack.c.l.b16 %v1498
        %v1524 = vunpack.c.h.b16 %v1498
        %v1525 = vunpack.c.l.b16 %v1499
        %v1526 = vunpack.c.h.b16 %v1499
        %v1527 = vunpack.c.l.b16 %v1500
        %v1528 = vunpack.c.h.b16 %v1500
        %v1529 = vunpack.c.l.b16 %v1501
        %v1530 = vunpack.c.h.b16 %v1501
        %v1531 = vunpack.c.l.b16 %v1502
        %v1532 = vunpack.c.h.b16 %v1502
        %v1533 = vpack.c.b16 %v1519, %v1517
        %v1534 = vpack.c.b16 %v1520, %v1518
        %v1535 = vpack.c.b16 %v1523, %v1521
        %v1536 = vpack.c.b16 %v1524, %v1522
        %v1537 = vpack.c.b16 %v1527, %v1525
        %v1538 = vpack.c.b16 %v1528, %v1526
        %v1539 = vpack.c.b16 %v1531, %v1529
        %v1540 = vpack.c.b16 %v1532, %v1530
        %v1550 = vsel %vm713, %v1494, 0
        %1552 = vmatpush.bf16.msra.mxu0 0
        %1553 = vmatpush.bf16.msra.mxu0 0
        %1554 = vmatpush.bf16.msra.mxu0 0
        %1555 = vmatpush.bf16.msra.mxu0 0
        %1556 = vmatpush.bf16.msra.mxu0 %v1539
        %1557 = vmatpush.bf16.msra.mxu0 %v1537
        %1558 = vmatpush.bf16.msra.mxu0 %v1535
        %1559 = vmatpush.bf16.msra.mxu0 %v1533
        %1560 = vmatmul.bf16.gmra.mxu0 %v1550
        %v1561 = vpop.f32.mrf.mxu0
        %v1562 = vadd.f32 %v1505, %v1561
        %v1563 = vpop.f32.mrf.mxu0
        %v1564 = vadd.f32 %v1505, %v1563
        %1565 = vdwg.mxu0
        %1566 = vmatpush.bf16.msra.mxu0 0
        %1567 = vmatpush.bf16.msra.mxu0 0
        %1568 = vmatpush.bf16.msra.mxu0 0
        %1569 = vmatpush.bf16.msra.mxu0 0
        %1570 = vmatpush.bf16.msra.mxu0 %v1540
        %1571 = vmatpush.bf16.msra.mxu0 %v1538
        %1572 = vmatpush.bf16.msra.mxu0 %v1536
        %1573 = vmatpush.bf16.msra.mxu0 %v1534
        %1574 = vmatmul.bf16.gmra.mxu0 %v1550
        %v1575 = vpop.f32.mrf.mxu0
        %v1576 = vadd.f32 %v1506, %v1575
        %v1577 = vpop.f32.mrf.mxu0
        %v1578 = vadd.f32 %v1506, %v1577
        %1579 = vdwg.mxu0
        %v1580 = vmul.f32 %v1562, 1.702
        %v1581 = vmul.f32 %v1576, 1.702
        %v1582 = vmul.f32 %v1564, 1.702
        %v1583 = vmul.f32 %v1578, 1.702
        %v1584 = vxor.u32 %v1580, 2147483648
        %v1585 = vxor.u32 %v1581, 2147483648
        %v1586 = vxor.u32 %v1582, 2147483648
        %v1587 = vxor.u32 %v1583, 2147483648
        %v1588 = vmul.f32 %v1584, 1.442695
        %v1589 = vpow.pop %v1588
        %v1590 = vmul.f32 %v1585, 1.442695
        %v1591 = vpow.pop %v1590
        %v1592 = vmul.f32 %v1586, 1.442695
        %v1593 = vpow.pop %v1592
        %v1594 = vmul.f32 %v1587, 1.442695
        %v1595 = vpow.pop %v1594
        %v1596 = vadd.f32 %v1589, 1.0
        %v1597 = vadd.f32 %v1591, 1.0
        %v1598 = vadd.f32 %v1593, 1.0
        %v1599 = vadd.f32 %v1595, 1.0
        %v1600 = vrcp.pop %v1596
        %v1601 = vmul.f32 %v1596, %v1600
        %v1602 = vsub.f32 1.0, %v1601
        %v1603 = vmul.f32 %v1600, %v1602
        %v1604 = vadd.f32 %v1600, %v1603
        %vm1605 = vweird.f32 %v1596
        %vm1606 = vweird.f32 %v1600
        %vm1607 = vmor %vm1605, %vm1606
        %v1608 = vsel %vm1607, %v1600, %v1604
        %v1609 = vand.u32 2147483647, %v1596
        %vm1610 = vcmp.eq.f32.partialorder %v1609, 8.507059e+37
        %v1611 = vand.u32 %v1596, 2147483648
        %v1612 = vor.u32 1.1754944e-38, %v1611
        %v1613 = vsel %vm1610, %v1612, %v1608
        %v1614 = vmul.f32 1.0, %v1613
        %v1615 = vrcp.pop %v1597
        %v1616 = vmul.f32 %v1597, %v1615
        %v1617 = vsub.f32 1.0, %v1616
        %v1618 = vmul.f32 %v1615, %v1617
        %v1619 = vadd.f32 %v1615, %v1618
        %vm1620 = vweird.f32 %v1597
        %vm1621 = vweird.f32 %v1615
        %vm1622 = vmor %vm1620, %vm1621
        %v1623 = vsel %vm1622, %v1615, %v1619
        %v1624 = vand.u32 2147483647, %v1597
        %vm1625 = vcmp.eq.f32.partialorder %v1624, 8.507059e+37
        %v1626 = vand.u32 %v1597, 2147483648
        %v1627 = vor.u32 1.1754944e-38, %v1626
        %v1628 = vsel %vm1625, %v1627, %v1623
        %v1629 = vmul.f32 1.0, %v1628
        %v1630 = vrcp.pop %v1598
        %v1631 = vmul.f32 %v1598, %v1630
        %v1632 = vsub.f32 1.0, %v1631
        %v1633 = vmul.f32 %v1630, %v1632
        %v1634 = vadd.f32 %v1630, %v1633
        %vm1635 = vweird.f32 %v1598
        %vm1636 = vweird.f32 %v1630
        %vm1637 = vmor %vm1635, %vm1636
        %v1638 = vsel %vm1637, %v1630, %v1634
        %v1639 = vand.u32 2147483647, %v1598
        %vm1640 = vcmp.eq.f32.partialorder %v1639, 8.507059e+37
        %v1641 = vand.u32 %v1598, 2147483648
        %v1642 = vor.u32 1.1754944e-38, %v1641
        %v1643 = vsel %vm1640, %v1642, %v1638
        %v1644 = vmul.f32 1.0, %v1643
        %v1645 = vrcp.pop %v1599
        %v1646 = vmul.f32 %v1599, %v1645
        %v1647 = vsub.f32 1.0, %v1646
        %v1648 = vmul.f32 %v1645, %v1647
        %v1649 = vadd.f32 %v1645, %v1648
        %vm1650 = vweird.f32 %v1599
        %vm1651 = vweird.f32 %v1645
        %vm1652 = vmor %vm1650, %vm1651
        %v1653 = vsel %vm1652, %v1645, %v1649
        %v1654 = vand.u32 2147483647, %v1599
        %vm1655 = vcmp.eq.f32.partialorder %v1654, 8.507059e+37
        %v1656 = vand.u32 %v1599, 2147483648
        %v1657 = vor.u32 1.1754944e-38, %v1656
        %v1658 = vsel %vm1655, %v1657, %v1653
        %v1659 = vmul.f32 1.0, %v1658
        %v1660 = vmul.f32 %v1562, %v1614
        %v1661 = vmul.f32 %v1576, %v1629
        %v1662 = vmul.f32 %v1564, %v1644
        %v1663 = vmul.f32 %v1578, %v1659
        %v1664 = vpack.c.bf16 %v1662, %v1660
        %v1665 = vpack.c.bf16 %v1663, %v1661
        %v1666 = vld [vmem:[%s694] sm:$0xf]
        %v1667 = vld [vmem:[%s694 + $0x4] sm:$0xf]
        %v1668 = vld [vmem:[%s694 + $0x8] sm:$0xf]
        %v1669 = vld [vmem:[%s694 + $0xc] sm:$0xf]
        %v1670 = vld [vmem:[%s694 + $0x10] sm:$0xf]
        %v1671 = vld [vmem:[%s694 + $0x14] sm:$0xf]
        %v1672 = vld [vmem:[%s694 + $0x18] sm:$0xf]
        %v1673 = vld [vmem:[%s694 + $0x1c] sm:$0xf]
        %v1674 = vld [vmem:[%s694 + $0x20] sm:$0xf]
        %v1675 = vld [vmem:[%s694 + $0x24] sm:$0xf]
        %v1676 = vld [vmem:[%s694 + $0x28] sm:$0xf]
        %v1677 = vld [vmem:[%s694 + $0x2c] sm:$0xf]
        %v1678 = vld [vmem:[%s694 + $0x30] sm:$0xf]
        %v1679 = vld [vmem:[%s694 + $0x34] sm:$0xf]
        %v1680 = vld [vmem:[%s694 + $0x38] sm:$0xf]
        %v1681 = vld [vmem:[%s694 + $0x3c] sm:$0xf]
        %v1682 = vld [vmem:[%s694 + $0x40] sm:$0xf]
        %v1683 = vld [vmem:[%s694 + $0x44] sm:$0xf]
        %v1684 = vld [vmem:[%s694 + $0x48] sm:$0xf]
        %v1685 = vld [vmem:[%s694 + $0x4c] sm:$0xf]
        %v1686 = vld [vmem:[%s694 + $0x50] sm:$0xf]
        %v1687 = vld [vmem:[%s694 + $0x54] sm:$0xf]
        %v1688 = vld [vmem:[%s694 + $0x58] sm:$0xf]
        %v1689 = vld [vmem:[%s694 + $0x5c] sm:$0xf]
        %v1690 = vld [vmem:[%s694 + $0x60] sm:$0xf]
        %v1691 = vld [vmem:[%s694 + $0x64] sm:$0xf]
        %v1692 = vld [vmem:[%s694 + $0x68] sm:$0xf]
        %v1693 = vld [vmem:[%s694 + $0x6c] sm:$0xf]
        %v1694 = vld [vmem:[%s694 + $0x70] sm:$0xf]
        %v1695 = vld [vmem:[%s694 + $0x74] sm:$0xf]
        %v1696 = vld [vmem:[%s694 + $0x78] sm:$0xf]
        %v1697 = vld [vmem:[%s694 + $0x7c] sm:$0xf]
        %v1698 = vld [vmem:[%s697] sm:$0x1]
        %v1700 = vperm.slane %v1698, 0
        %v1734 = vunpack.c.l.b16 %v1666
        %v1735 = vunpack.c.l.b16 %v1667
        %v1736 = vunpack.c.l.b16 %v1668
        %v1737 = vunpack.c.l.b16 %v1669
        %v1738 = vunpack.c.l.b16 %v1670
        %v1739 = vunpack.c.l.b16 %v1671
        %v1740 = vunpack.c.l.b16 %v1672
        %v1741 = vunpack.c.l.b16 %v1673
        %v1742 = vunpack.c.l.b16 %v1674
        %v1743 = vunpack.c.l.b16 %v1675
        %v1744 = vunpack.c.l.b16 %v1676
        %v1745 = vunpack.c.l.b16 %v1677
        %v1746 = vunpack.c.l.b16 %v1678
        %v1747 = vunpack.c.l.b16 %v1679
        %v1748 = vunpack.c.l.b16 %v1680
        %v1749 = vunpack.c.l.b16 %v1681
        %v1750 = vunpack.c.l.b16 %v1682
        %v1751 = vunpack.c.l.b16 %v1683
        %v1752 = vunpack.c.l.b16 %v1684
        %v1753 = vunpack.c.l.b16 %v1685
        %v1754 = vunpack.c.l.b16 %v1686
        %v1755 = vunpack.c.l.b16 %v1687
        %v1756 = vunpack.c.l.b16 %v1688
        %v1757 = vunpack.c.l.b16 %v1689
        %v1758 = vunpack.c.l.b16 %v1690
        %v1759 = vunpack.c.l.b16 %v1691
        %v1760 = vunpack.c.l.b16 %v1692
        %v1761 = vunpack.c.l.b16 %v1693
        %v1762 = vunpack.c.l.b16 %v1694
        %v1763 = vunpack.c.l.b16 %v1695
        %v1764 = vunpack.c.l.b16 %v1696
        %v1765 = vunpack.c.l.b16 %v1697
        %v1766 = vpack.c.b16 %v1735, %v1734
        %v1767 = vpack.c.b16 %v1737, %v1736
        %v1768 = vpack.c.b16 %v1739, %v1738
        %v1769 = vpack.c.b16 %v1741, %v1740
        %v1770 = vpack.c.b16 %v1743, %v1742
        %v1771 = vpack.c.b16 %v1745, %v1744
        %v1772 = vpack.c.b16 %v1747, %v1746
        %v1773 = vpack.c.b16 %v1749, %v1748
        %v1774 = vpack.c.b16 %v1751, %v1750
        %v1775 = vpack.c.b16 %v1753, %v1752
        %v1776 = vpack.c.b16 %v1755, %v1754
        %v1777 = vpack.c.b16 %v1757, %v1756
        %v1778 = vpack.c.b16 %v1759, %v1758
        %v1779 = vpack.c.b16 %v1761, %v1760
        %v1780 = vpack.c.b16 %v1763, %v1762
        %v1781 = vpack.c.b16 %v1765, %v1764
        %1798 = vmatpush.bf16.msra.mxu0 %v1773
        %1799 = vmatpush.bf16.msra.mxu0 %v1772
        %1800 = vmatpush.bf16.msra.mxu0 %v1771
        %1801 = vmatpush.bf16.msra.mxu0 %v1770
        %1802 = vmatpush.bf16.msra.mxu0 %v1769
        %1803 = vmatpush.bf16.msra.mxu0 %v1768
        %1804 = vmatpush.bf16.msra.mxu0 %v1767
        %1805 = vmatpush.bf16.msra.mxu0 %v1766
        %1806 = vmatmul.bf16.gmra.mxu0 %v1664
        %v1807 = vpop.f32.mrf.mxu0
        %v1808 = vadd.f32 %v1700, %v1807
        %v1809 = vpop.f32.mrf.mxu0
        %v1810 = vadd.f32 %v1700, %v1809
        %1811 = vdwg.mxu0
        %1812 = vmatpush.bf16.msra.mxu0 %v1781
        %1813 = vmatpush.bf16.msra.mxu0 %v1780
        %1814 = vmatpush.bf16.msra.mxu0 %v1779
        %1815 = vmatpush.bf16.msra.mxu0 %v1778
        %1816 = vmatpush.bf16.msra.mxu0 %v1777
        %1817 = vmatpush.bf16.msra.mxu0 %v1776
        %1818 = vmatpush.bf16.msra.mxu0 %v1775
        %1819 = vmatpush.bf16.msra.mxu0 %v1774
        %1820 = vmatmul.bf16.gmra.mxu0 %v1665
        %v1821 = vpop.f32.mrf.mxu0
        %v1822 = vadd.f32 %v1808, %v1821
        %v1823 = vpop.f32.mrf.mxu0
        %v1824 = vadd.f32 %v1810, %v1823
        %1825 = vdwg.mxu0
        %v1826 = vadd.f32 %v1436, %v1822
        %v1827 = vadd.f32 %v1437, %v1824
        %1828 = vst.msk [vmem:[#allocation2] sm:$0xff] %vm713, %v1826
        %1829 = vst.msk [vmem:[#allocation2 + $0x8] sm:$0xff] %vm713, %v1827
        %p1830 = scmp.eq.s32.totalorder %s32, 1
        // Predicated region
        $region85: #{tpu_custom_call.1} parent=79 // pred_check
          %p1831 = pneg %p1830
        $region86: #{tpu_custom_call.1} parent=79 // pred_check_branch
          %1833 = sbr.rel (%p1831) target = $region88
        $region87: #{tpu_custom_call.1} parent=79 // pred_region
          %v1834 = vld [vmem:[%s13] sm:$0x1]
          %v1835 = vld [vmem:[%s14] sm:$0x1]
          %v1836 = vsel %vm713, %v1826, 0.0
          %1837 = vadd.xlane.f32.xlu0 %v1836
          %v1838 = vpop.xlane.xlu0 %1837
          %v1839 = vsel %vm713, %v1827, 0.0
          %1840 = vadd.xlane.f32.xlu0 %v1839
          %v1841 = vpop.xlane.xlu0 %1840
          %v1842 = vmul.f32 %v1838, %v726
          %v1843 = vmul.f32 %v1841, %v726
          %v1844 = vsub.f32 %v1826, %v1842
          %v1845 = vsub.f32 %v1827, %v1843
          %v1846 = vmul.f32 %v1844, %v1844
          %v1847 = vmul.f32 %v1845, %v1845
          %v1848 = vsel %vm713, %v1846, 0.0
          %1849 = vadd.xlane.f32.xlu0 %v1848
          %v1850 = vpop.xlane.xlu0 %1849
          %v1851 = vsel %vm713, %v1847, 0.0
          %1852 = vadd.xlane.f32.xlu0 %v1851
          %v1853 = vpop.xlane.xlu0 %1852
          %v1854 = vmul.f32 %v1850, %v726
          %v1855 = vmul.f32 %v1853, %v726
          %v1856 = vadd.f32 %v1854, 1e-05
          %v1857 = vadd.f32 %v1855, 1e-05
          %v1858 = vrsqrt.pop %v1856
          %v1859 = vmul.f32 %v1858, %v1856
          %v1860 = vmul.f32 %v1859, %v1858
          %v1861 = vmul.f32 0.5, %v1860
          %v1862 = vsub.f32 1.5, %v1861
          %v1863 = vmul.f32 %v1858, %v1862
          %vm1864 = vweird.f32 %v1856
          %vm1865 = vweird.f32 %v1858
          %vm1866 = vmor %vm1864, %vm1865
          %v1867 = vsel %vm1866, %v1858, %v1863
          %v1868 = vrsqrt.pop %v1857
          %v1869 = vmul.f32 %v1868, %v1857
          %v1870 = vmul.f32 %v1869, %v1868
          %v1871 = vmul.f32 0.5, %v1870
          %v1872 = vsub.f32 1.5, %v1871
          %v1873 = vmul.f32 %v1868, %v1872
          %vm1874 = vweird.f32 %v1857
          %vm1875 = vweird.f32 %v1868
          %vm1876 = vmor %vm1874, %vm1875
          %v1877 = vsel %vm1876, %v1868, %v1873
          %v1878 = vmul.f32 %v1844, %v1867
          %v1879 = vmul.f32 %v1845, %v1877
          %v1881 = vperm.slane %v1834, 0
          %v1883 = vmul.f32 %v1878, %v1881
          %v1884 = vmul.f32 %v1879, %v1881
          %v1886 = vperm.slane %v1835, 0
          %v1888 = vadd.f32 %v1883, %v1886
          %v1889 = vadd.f32 %v1884, %v1886
          %1890 = vst.msk [vmem:[#allocation4] sm:$0xff] %vm713, %v1888
          %1891 = vst.msk [vmem:[#allocation4 + $0x8] sm:$0xff] %vm713, %v1889
        $region88: #{tpu_custom_call.1} parent=79 // pred_fallthru
          _
        // Predicated region
        $region89: #{tpu_custom_call.1} parent=79 // pred_check
          %p1892 = pneg %p437
        $region90: #{tpu_custom_call.1} parent=79 // pred_check_branch
          %1894 = sbr.rel (%p1892) target = $region92
        $region91: #{tpu_custom_call.1} parent=79 // pred_region
          %s1895 = smul.u32 2, %s31
          %1897 = vsyncadd [#allocation5], 0
          %s1898 = smul.addr %s1895, 8
          %s1899 = scalar_lea.hbm %s15, %s1898
          %s1900 = sshll.u32 [#allocation4], 4
          %s1901 = int_to_ptr.vmem [resolvable:$true] %s1900
          %s1902 = sshll.u32 %s1899, 4
          %s1903 = int_to_ptr.hbm [resolvable:$true] %s1902
          %1908 = dma.vmem_to_hbm [thread:$0]  %s1901, 256, %s1903, [#allocation5], 128, 128, 8
        $region92: #{tpu_custom_call.1} parent=79 // pred_fallthru
          _
        // Predicated region
        $region93: #{tpu_custom_call.1} parent=79 // pred_check
          %p1909 = pneg %p437
        $region94: #{tpu_custom_call.1} parent=79 // pred_check_branch
          %1911 = sbr.rel (%p1909) target = $region96
        $region95: #{tpu_custom_call.1} parent=79 // pred_region
          %1913 = dma.done [#allocation5], 256
        $region96: #{tpu_custom_call.1} parent=79 // pred_fallthru
          _
      $region80: #{tpu_custom_call.1} parent=5 // pred_fallthru
        _
      %p1914 = scmp.le.s32.totalorder 2, %s22
      // Predicated region
      $region97: #{tpu_custom_call.1} parent=5 // pred_check
        %p1915 = pneg %p1914
      $region98: #{tpu_custom_call.1} parent=5 // pred_check_branch
        %1917 = sbr.rel (%p1915) target = $region100
      $region99: #{tpu_custom_call.1} parent=5 // pred_region
        %s1918 = ssub.s32 %s22, 2
      $region100: #{tpu_custom_call.1} parent=5 // pred_fallthru
        _
    $region6: #{tpu_custom_call.1} parent=1 // loop_footer
      %s26 = sadd.s32 1, %s22
    $region7: #{tpu_custom_call.1} parent=1 // loop_footer_branch
      %21 = sbr.rel target = $region3
    $region8: #{tpu_custom_call.1} parent=1 // loop_exit
      _
    %1919 = vsyncpa [#allocation5], 1
    %s1920 = scalar_lea.sflag [#allocation5], 1
    %1921 = vsyncpa %s1920, 1

</llo_original>
